<compile_context>
chip_gen: v5e
topology: v5e:2x2
jax: 0.10.0
libtpu: 0.0.40
codegen_flags: <defaults>
</compile_context>

<pallas_src>
import jax
import jax.numpy as jnp
from jax import lax
from jax.experimental import pallas as pl
from jax.experimental.pallas import tpu as pltpu


def critic_kernel(x_ref, vb_ref, wx_ref, cw_ref, cb_ref, gamma_ref, beta_ref,
                  out_ref, hpad_ref):
    """One batch BLOCK per grid step (grid axis 0, 'parallel')."""
    Bb, T, D_in = x_ref.shape
    H = wx_ref.shape[1]
    nb = cw_ref.shape[0]
    K = cw_ref.shape[1]
    pad = K // 2
    eps = 1e-5
    leak = 0.2

    # Initial linear: cat([x, vector]) @ W + b == x @ Wx + (vector @ Wv + b).
    # The vector branch + bias were pre-folded into vb (f32) in the wrapper;
    # x / Wx are bf16 MXU operands with f32 accumulation.
    h2 = jnp.dot(x_ref[...].reshape(Bb * T, D_in), wx_ref[...],
                 preferred_element_type=jnp.float32)              # (Bb*T, H) f32
    h = h2.reshape(Bb, T, H) + vb_ref[...]                        # + (Bb, 1, H)

    # Persistent zero-padded scratch: zero the halo rows once; only the middle
    # [pad : pad+T] slab is rewritten per res block.
    hpad_ref[:, :pad, :] = jnp.zeros((Bb, pad, H), jnp.bfloat16)
    hpad_ref[:, pad + T:, :] = jnp.zeros((Bb, pad, H), jnp.bfloat16)

    for i in range(nb):                       # nb is small & static -> unroll
        resid = h
        hpad_ref[:, pad:pad + T, :] = h.astype(jnp.bfloat16)

        # Conv1d(k=K, stride=1, pad=K//2) as K accumulated (Bb*T, H) @ (H, H)
        # dots on zero-padded shifted views of the scratch ref (lane-aligned
        # taps, no (T, K*H) concat build).
        acc = jnp.dot(hpad_ref[:, 0:T, :].reshape(Bb * T, H), cw_ref[i, 0],
                      preferred_element_type=jnp.float32)
        for k in range(1, K):
            tap = hpad_ref[:, k:k + T, :].reshape(Bb * T, H)
            acc = acc + jnp.dot(tap, cw_ref[i, k],
                                preferred_element_type=jnp.float32)
        acc = acc.reshape(Bb, T, H) + cb_ref[i]                   # + (1, H)

        # InstanceNorm1d over time per (instance, channel); centered two-pass
        # (biased) variance, eps=1e-5, for parity with PyTorch.
        mean = jnp.mean(acc, axis=1, keepdims=True)               # (Bb, 1, H)
        cen = acc - mean
        var = jnp.mean(cen * cen, axis=1, keepdims=True)
        y = cen * lax.rsqrt(var + eps)
        y = y * gamma_ref[i] + beta_ref[i]
        # LeakyReLU(0.2) + residual
        y = jnp.where(y > 0, y, leak * y)
        h = y + resid

    # mean over (channels, time) -> one scalar per instance in this block
    s = jnp.sum(h, axis=2)                                        # (Bb, T) lane reduce
    tot = jnp.sum(s, axis=1, keepdims=True)                       # (Bb, 1) sublane reduce
    out_ref[...] = tot * (1.0 / (T * H))


def critic_forward(params, x, length, vector, *, batch_block=None):
    del length  # unused by the PyTorch forward
    B, T, D_in = x.shape
    H = params["wx"].shape[1]
    nb, K, _, _ = params["conv_w"].shape
    pad = K // 2

    if batch_block is None:
        # Two grid steps (one per v7x TensorCore) only when each half still fills
        # the MXU rows (B_blk * T >= 256); otherwise one merged step.  'parallel'
        # is a no-op on single-TC v5e/v6e.
        if B % 2 == 0 and (B // 2) * T >= 256:
            batch_block = B // 2
        else:
            batch_block = B
    grid = pl.cdiv(B, batch_block)
    B_pad = grid * batch_block

    # Pre-fold the vector branch + bias (tiny B x H matmul, free in XLA).
    vec_bias = (vector @ params["wv"] + params["b0"]).astype(jnp.float32)
    vec_bias = vec_bias.reshape(B, 1, H)

    # bf16 MXU operands (f32 accumulation happens in-kernel).
    x_bf = x.astype(jnp.bfloat16)
    if B_pad != B:
        x_bf = jnp.pad(x_bf, ((0, B_pad - B), (0, 0), (0, 0)))
        vec_bias = jnp.pad(vec_bias, ((0, B_pad - B), (0, 0), (0, 0)))
    wx = params["wx"].astype(jnp.bfloat16)                 # (D_in, H)
    cw = params["conv_w"].astype(jnp.bfloat16)             # (nb, K, H, H) per-tap

    out = pl.pallas_call(
        critic_kernel,
        out_shape=jax.ShapeDtypeStruct((B_pad, 1), jnp.float32),
        grid_spec=pltpu.PrefetchScalarGridSpec(
            num_scalar_prefetch=0,
            grid=(grid,),
            in_specs=[
                pl.BlockSpec((batch_block, T, D_in), lambda g: (g, 0, 0)),  # x (streamed)
                pl.BlockSpec((batch_block, 1, H), lambda g: (g, 0, 0)),     # vec bias
                pl.BlockSpec((D_in, H), lambda g: (0, 0)),                  # wx (resident)
                pl.BlockSpec((nb, K, H, H), lambda g: (0, 0, 0, 0)),        # conv w (resident)
                pl.BlockSpec((nb, 1, H), lambda g: (0, 0, 0)),              # conv bias
                pl.BlockSpec((nb, 1, H), lambda g: (0, 0, 0)),              # IN gamma
                pl.BlockSpec((nb, 1, H), lambda g: (0, 0, 0)),              # IN beta
            ],
            out_specs=pl.BlockSpec((batch_block, 1), lambda g: (g, 0)),
            scratch_shapes=[
                pltpu.VMEM((batch_block, T + 2 * pad, H), jnp.bfloat16),    # padded h
            ],
        ),
        compiler_params=pltpu.CompilerParams(
            dimension_semantics=("parallel",),          # 2 TCs on v7x when grid==2
            vmem_limit_bytes=32 * 1024 * 1024),         # explicit (v5e default is 16 MiB)
    )(x_bf, vec_bias, wx, cw, params["conv_b"], params["gamma"], params["beta"])
    return out[:B, 0]


def init_params(key, input_size, embed_size, hidden_size, num_res_blocks, ksize=5):
    ks = jax.random.split(key, 6)
    w_full = 0.1 * jax.random.normal(
        ks[0], (input_size + embed_size, hidden_size), jnp.float32)
    return dict(
        wx=w_full[:input_size],                               # (D_in, H)
        wv=w_full[input_size:],                               # (D_emb, H)
        b0=0.1 * jax.random.normal(ks[1], (1, hidden_size), jnp.float32),
        # conv_w[i, k] is (in_ch, out_ch)  <->  torch weight[out, in, k].T
        conv_w=0.05 * jax.random.normal(
            ks[2], (num_res_blocks, ksize, hidden_size, hidden_size), jnp.float32),
        conv_b=0.1 * jax.random.normal(
            ks[3], (num_res_blocks, 1, hidden_size), jnp.float32),
        gamma=1.0 + 0.1 * jax.random.normal(
            ks[4], (num_res_blocks, 1, hidden_size), jnp.float32),
        beta=0.1 * jax.random.normal(
            ks[5], (num_res_blocks, 1, hidden_size), jnp.float32),
    )


def critic_reference(params, x, length, vector):
    """Pure-JAX (f32) mirror of the PyTorch forward for verification."""
    del length
    B, T, _ = x.shape
    H = params["wx"].shape[1]
    xcat = jnp.concatenate(
        [x, jnp.broadcast_to(vector[:, None, :], (B, T, vector.shape[1]))], axis=2)
    w_full = jnp.concatenate([params["wx"], params["wv"]], axis=0)
    h = jnp.einsum("btd,dh->bth", xcat, w_full) + params["b0"][None]
    nb, K, _, _ = params["conv_w"].shape
    pad = K // 2
    for i in range(nb):
        resid = h
        hp = jnp.pad(h, ((0, 0), (pad, pad), (0, 0)))
        acc = jnp.broadcast_to(params["conv_b"][i][None], (B, T, H)).astype(jnp.float32)
        for k in range(K):
            acc = acc + jnp.einsum("btc,cd->btd", hp[:, k:k + T, :], params["conv_w"][i, k])
        mean = jnp.mean(acc, axis=1, keepdims=True)
        var = jnp.mean((acc - mean) ** 2, axis=1, keepdims=True)
        y = (acc - mean) / jnp.sqrt(var + 1e-5)
        y = y * params["gamma"][i][None] + params["beta"][i][None]
        y = jnp.where(y > 0, y, 0.2 * y)
        h = y + resid
    return jnp.mean(h, axis=(1, 2))


if __name__ == "__main__":
    # small shapes consistent with the module's forward
    B, T = 2, 16
    input_size, embed_size, hidden_size, num_res_blocks = 8, 24, 32, 3

    key = jax.random.PRNGKey(0)
    kp, kx, kv = jax.random.split(key, 3)
    params = init_params(kp, input_size, embed_size, hidden_size, num_res_blocks)
    x = jax.random.normal(kx, (B, T, input_size), jnp.float32)
    vector = jax.random.normal(kv, (B, embed_size), jnp.float32)
    length = jnp.full((B,), T, jnp.int32)   # unused (parity with PyTorch signature)

    out = critic_forward(params, x, length, vector)
    jax.block_until_ready(out)

    ref = critic_reference(params, x, length, vector)
    assert out.shape == (B,)
    # bf16 MXU operands with f32 accumulation -> slightly looser tolerance than pure f32.
    assert jnp.allclose(out, ref, atol=2e-2, rtol=2e-2), (out, ref)
    print("KERNEL_OK")
</pallas_src>

<mosaic_0001>
module attributes {stable_mosaic.version = 11 : i64} {
  func.func @critic_kernel(%arg0: i32, %arg1: memref<2x16x8xbf16, #tpu.memory_space<vmem>>, %arg2: memref<2x1x32xf32, #tpu.memory_space<vmem>>, %arg3: memref<8x32xbf16, #tpu.memory_space<vmem>>, %arg4: memref<3x5x32x32xbf16, #tpu.memory_space<vmem>>, %arg5: memref<3x1x32xf32, #tpu.memory_space<vmem>>, %arg6: memref<3x1x32xf32, #tpu.memory_space<vmem>>, %arg7: memref<3x1x32xf32, #tpu.memory_space<vmem>>, %arg8: memref<2x1xf32, #tpu.memory_space<vmem>>, %arg9: memref<2x20x32xbf16, #tpu.memory_space<vmem>>) attributes {dimension_semantics = [#tpu.dimension_semantics<parallel>], iteration_bounds = array<i64: 1>, scalar_prefetch = 0 : i64, scratch_operands = 1 : i64, tpu.core_type = #tpu.core_type<tc>, window_params = [{transform_indices = @transform_0, window_bounds = array<i64: 2, 16, 8>}, {transform_indices = @transform_1, window_bounds = array<i64: 2, 1, 32>}, {pipeline_mode = #tpu.pipeline_mode<synchronous>, transform_indices = @transform_2, window_bounds = array<i64: 8, 32>}, {pipeline_mode = #tpu.pipeline_mode<synchronous>, transform_indices = @transform_3, window_bounds = array<i64: 3, 5, 32, 32>}, {pipeline_mode = #tpu.pipeline_mode<synchronous>, transform_indices = @transform_4, window_bounds = array<i64: 3, 1, 32>}, {pipeline_mode = #tpu.pipeline_mode<synchronous>, transform_indices = @transform_5, window_bounds = array<i64: 3, 1, 32>}, {pipeline_mode = #tpu.pipeline_mode<synchronous>, transform_indices = @transform_6, window_bounds = array<i64: 3, 1, 32>}, {transform_indices = @transform_7, window_bounds = array<i64: 2, 1>}]} {
    %c0 = arith.constant 0 : index
    %c0_0 = arith.constant 0 : index
    %c0_1 = arith.constant 0 : index
    %0 = vector.load %arg1[%c0, %c0_0, %c0_1] : memref<2x16x8xbf16, #tpu.memory_space<vmem>>, vector<2x16x8xbf16>
    %1 = vector.shape_cast %0 : vector<2x16x8xbf16> to vector<32x8xbf16>
    %c0_2 = arith.constant 0 : index
    %c0_3 = arith.constant 0 : index
    %2 = vector.load %arg3[%c0_2, %c0_3] : memref<8x32xbf16, #tpu.memory_space<vmem>>, vector<8x32xbf16>
    %cst = arith.constant dense<0.000000e+00> : vector<32x32xf32>
    %3 = tpu.matmul %1, %2, %cst {dimension_numbers = #tpu.dot_dimension_numbers<[1], [0], [0], [1], [0, 0, 1, 1], [], []>} : vector<32x8xbf16>, vector<8x32xbf16>, vector<32x32xf32> -> vector<32x32xf32>
    %4 = vector.shape_cast %3 : vector<32x32xf32> to vector<2x16x32xf32>
    %c0_4 = arith.constant 0 : index
    %c0_5 = arith.constant 0 : index
    %c0_6 = arith.constant 0 : index
    %5 = vector.load %arg2[%c0_4, %c0_5, %c0_6] : memref<2x1x32xf32, #tpu.memory_space<vmem>>, vector<2x1x32xf32>
    %6 = vector.broadcast %5 : vector<2x1x32xf32> to vector<2x16x32xf32>
    %7 = arith.addf %4, %6 : vector<2x16x32xf32>
    %cst_7 = arith.constant 0.000000e+00 : bf16
    %8 = vector.broadcast %cst_7 : bf16 to vector<2x2x32xbf16>
    %c0_8 = arith.constant 0 : index
    %c0_9 = arith.constant 0 : index
    %c0_10 = arith.constant 0 : index
    %9 = vector.load %arg9[%c0_8, %c0_9, %c0_10] : memref<2x20x32xbf16, #tpu.memory_space<vmem>>, vector<2x2x32xbf16>
    tpu.vector_store %arg9[%c0_8, %c0_9, %c0_10], %8 {strides = array<i32>} : memref<2x20x32xbf16, #tpu.memory_space<vmem>>, vector<2x2x32xbf16>,
    %cst_11 = arith.constant 0.000000e+00 : bf16
    %10 = vector.broadcast %cst_11 : bf16 to vector<2x2x32xbf16>
    %c0_12 = arith.constant 0 : index
    %c18 = arith.constant 18 : index
    %c0_13 = arith.constant 0 : index
    %11 = vector.load %arg9[%c0_12, %c18, %c0_13] : memref<2x20x32xbf16, #tpu.memory_space<vmem>>, vector<2x2x32xbf16>
    tpu.vector_store %arg9[%c0_12, %c18, %c0_13], %10 {strides = array<i32>} : memref<2x20x32xbf16, #tpu.memory_space<vmem>>, vector<2x2x32xbf16>,
    %12 = arith.truncf %7 : vector<2x16x32xf32> to vector<2x16x32xbf16>
    %c0_14 = arith.constant 0 : index
    %c2 = arith.constant 2 : index
    %c0_15 = arith.constant 0 : index
    %13 = vector.load %arg9[%c0_14, %c2, %c0_15] : memref<2x20x32xbf16, #tpu.memory_space<vmem>>, vector<2x16x32xbf16>
    tpu.vector_store %arg9[%c0_14, %c2, %c0_15], %12 {strides = array<i32>} : memref<2x20x32xbf16, #tpu.memory_space<vmem>>, vector<2x16x32xbf16>,
    %c0_16 = arith.constant 0 : index
    %c0_17 = arith.constant 0 : index
    %c0_18 = arith.constant 0 : index
    %14 = vector.load %arg9[%c0_16, %c0_17, %c0_18] : memref<2x20x32xbf16, #tpu.memory_space<vmem>>, vector<2x16x32xbf16>
    %15 = vector.shape_cast %14 : vector<2x16x32xbf16> to vector<32x32xbf16>
    %c0_19 = arith.constant 0 : index
    %c0_20 = arith.constant 0 : index
    %c0_21 = arith.constant 0 : index
    %c0_22 = arith.constant 0 : index
    %16 = vector.load %arg4[%c0_19, %c0_20, %c0_21, %c0_22] : memref<3x5x32x32xbf16, #tpu.memory_space<vmem>>, vector<1x1x32x32xbf16>
    %17 = vector.shape_cast %16 : vector<1x1x32x32xbf16> to vector<32x32xbf16>
    %cst_23 = arith.constant dense<0.000000e+00> : vector<32x32xf32>
    %18 = tpu.matmul %15, %17, %cst_23 {dimension_numbers = #tpu.dot_dimension_numbers<[1], [0], [0], [1], [0, 0, 1, 1], [], []>} : vector<32x32xbf16>, vector<32x32xbf16>, vector<32x32xf32> -> vector<32x32xf32>
    %c0_24 = arith.constant 0 : index
    %c1 = arith.constant 1 : index
    %c0_25 = arith.constant 0 : index
    %19 = vector.load %arg9[%c0_24, %c1, %c0_25] : memref<2x20x32xbf16, #tpu.memory_space<vmem>>, vector<2x16x32xbf16>
    %20 = vector.shape_cast %19 : vector<2x16x32xbf16> to vector<32x32xbf16>
    %c0_26 = arith.constant 0 : index
    %c1_27 = arith.constant 1 : index
    %c0_28 = arith.constant 0 : index
    %c0_29 = arith.constant 0 : index
    %21 = vector.load %arg4[%c0_26, %c1_27, %c0_28, %c0_29] : memref<3x5x32x32xbf16, #tpu.memory_space<vmem>>, vector<1x1x32x32xbf16>
    %22 = vector.shape_cast %21 : vector<1x1x32x32xbf16> to vector<32x32xbf16>
    %cst_30 = arith.constant dense<0.000000e+00> : vector<32x32xf32>
    %23 = tpu.matmul %20, %22, %cst_30 {dimension_numbers = #tpu.dot_dimension_numbers<[1], [0], [0], [1], [0, 0, 1, 1], [], []>} : vector<32x32xbf16>, vector<32x32xbf16>, vector<32x32xf32> -> vector<32x32xf32>
    %24 = arith.addf %18, %23 : vector<32x32xf32>
    %c0_31 = arith.constant 0 : index
    %c2_32 = arith.constant 2 : index
    %c0_33 = arith.constant 0 : index
    %25 = vector.load %arg9[%c0_31, %c2_32, %c0_33] : memref<2x20x32xbf16, #tpu.memory_space<vmem>>, vector<2x16x32xbf16>
    %26 = vector.shape_cast %25 : vector<2x16x32xbf16> to vector<32x32xbf16>
    %c0_34 = arith.constant 0 : index
    %c2_35 = arith.constant 2 : index
    %c0_36 = arith.constant 0 : index
    %c0_37 = arith.constant 0 : index
    %27 = vector.load %arg4[%c0_34, %c2_35, %c0_36, %c0_37] : memref<3x5x32x32xbf16, #tpu.memory_space<vmem>>, vector<1x1x32x32xbf16>
    %28 = vector.shape_cast %27 : vector<1x1x32x32xbf16> to vector<32x32xbf16>
    %cst_38 = arith.constant dense<0.000000e+00> : vector<32x32xf32>
    %29 = tpu.matmul %26, %28, %cst_38 {dimension_numbers = #tpu.dot_dimension_numbers<[1], [0], [0], [1], [0, 0, 1, 1], [], []>} : vector<32x32xbf16>, vector<32x32xbf16>, vector<32x32xf32> -> vector<32x32xf32>
    %30 = arith.addf %24, %29 : vector<32x32xf32>
    %c0_39 = arith.constant 0 : index
    %c3 = arith.constant 3 : index
    %c0_40 = arith.constant 0 : index
    %31 = vector.load %arg9[%c0_39, %c3, %c0_40] : memref<2x20x32xbf16, #tpu.memory_space<vmem>>, vector<2x16x32xbf16>
    %32 = vector.shape_cast %31 : vector<2x16x32xbf16> to vector<32x32xbf16>
    %c0_41 = arith.constant 0 : index
    %c3_42 = arith.constant 3 : index
    %c0_43 = arith.constant 0 : index
    %c0_44 = arith.constant 0 : index
    %33 = vector.load %arg4[%c0_41, %c3_42, %c0_43, %c0_44] : memref<3x5x32x32xbf16, #tpu.memory_space<vmem>>, vector<1x1x32x32xbf16>
    %34 = vector.shape_cast %33 : vector<1x1x32x32xbf16> to vector<32x32xbf16>
    %cst_45 = arith.constant dense<0.000000e+00> : vector<32x32xf32>
    %35 = tpu.matmul %32, %34, %cst_45 {dimension_numbers = #tpu.dot_dimension_numbers<[1], [0], [0], [1], [0, 0, 1, 1], [], []>} : vector<32x32xbf16>, vector<32x32xbf16>, vector<32x32xf32> -> vector<32x32xf32>
    %36 = arith.addf %30, %35 : vector<32x32xf32>
    %c0_46 = arith.constant 0 : index
    %c4 = arith.constant 4 : index
    %c0_47 = arith.constant 0 : index
    %37 = vector.load %arg9[%c0_46, %c4, %c0_47] : memref<2x20x32xbf16, #tpu.memory_space<vmem>>, vector<2x16x32xbf16>
    %38 = vector.shape_cast %37 : vector<2x16x32xbf16> to vector<32x32xbf16>
    %c0_48 = arith.constant 0 : index
    %c4_49 = arith.constant 4 : index
    %c0_50 = arith.constant 0 : index
    %c0_51 = arith.constant 0 : index
    %39 = vector.load %arg4[%c0_48, %c4_49, %c0_50, %c0_51] : memref<3x5x32x32xbf16, #tpu.memory_space<vmem>>, vector<1x1x32x32xbf16>
    %40 = vector.shape_cast %39 : vector<1x1x32x32xbf16> to vector<32x32xbf16>
    %cst_52 = arith.constant dense<0.000000e+00> : vector<32x32xf32>
    %41 = tpu.matmul %38, %40, %cst_52 {dimension_numbers = #tpu.dot_dimension_numbers<[1], [0], [0], [1], [0, 0, 1, 1], [], []>} : vector<32x32xbf16>, vector<32x32xbf16>, vector<32x32xf32> -> vector<32x32xf32>
    %42 = arith.addf %36, %41 : vector<32x32xf32>
    %43 = vector.shape_cast %42 : vector<32x32xf32> to vector<2x16x32xf32>
    %c0_53 = arith.constant 0 : index
    %c0_54 = arith.constant 0 : index
    %c0_55 = arith.constant 0 : index
    %44 = vector.load %arg5[%c0_53, %c0_54, %c0_55] : memref<3x1x32xf32, #tpu.memory_space<vmem>>, vector<1x1x32xf32>
    %45 = vector.shape_cast %44 : vector<1x1x32xf32> to vector<1x32xf32>
    %46 = vector.shape_cast %45 : vector<1x32xf32> to vector<1x1x32xf32>
    %47 = vector.broadcast %46 : vector<1x1x32xf32> to vector<2x16x32xf32>
    %48 = arith.addf %43, %47 : vector<2x16x32xf32>
    %cst_56 = arith.constant dense<0.000000e+00> : vector<2x32xf32>
    %49 = vector.multi_reduction <add>, %48, %cst_56 [1] : vector<2x16x32xf32> to vector<2x32xf32>
    %50 = vector.shape_cast %49 : vector<2x32xf32> to vector<2x1x32xf32>
    %cst_57 = arith.constant 1.600000e+01 : f32
    %51 = vector.broadcast %cst_57 : f32 to vector<2x1x32xf32>
    %52 = arith.divf %50, %51 : vector<2x1x32xf32>
    %53 = vector.broadcast %52 : vector<2x1x32xf32> to vector<2x16x32xf32>
    %54 = arith.subf %48, %53 : vector<2x16x32xf32>
    %55 = arith.mulf %54, %54 : vector<2x16x32xf32>
    %cst_58 = arith.constant dense<0.000000e+00> : vector<2x32xf32>
    %56 = vector.multi_reduction <add>, %55, %cst_58 [1] : vector<2x16x32xf32> to vector<2x32xf32>
    %57 = vector.shape_cast %56 : vector<2x32xf32> to vector<2x1x32xf32>
    %cst_59 = arith.constant 1.600000e+01 : f32
    %58 = vector.broadcast %cst_59 : f32 to vector<2x1x32xf32>
    %59 = arith.divf %57, %58 : vector<2x1x32xf32>
    %cst_60 = arith.constant 9.99999974E-6 : f32
    %60 = vector.broadcast %cst_60 : f32 to vector<2x1x32xf32>
    %61 = arith.addf %59, %60 : vector<2x1x32xf32>
    %62 = math.rsqrt %61 : vector<2x1x32xf32>
    %63 = vector.broadcast %62 : vector<2x1x32xf32> to vector<2x16x32xf32>
    %64 = arith.mulf %54, %63 : vector<2x16x32xf32>
    %c0_61 = arith.constant 0 : index
    %c0_62 = arith.constant 0 : index
    %c0_63 = arith.constant 0 : index
    %65 = vector.load %arg6[%c0_61, %c0_62, %c0_63] : memref<3x1x32xf32, #tpu.memory_space<vmem>>, vector<1x1x32xf32>
    %66 = vector.shape_cast %65 : vector<1x1x32xf32> to vector<1x32xf32>
    %67 = vector.shape_cast %66 : vector<1x32xf32> to vector<1x1x32xf32>
    %68 = vector.broadcast %67 : vector<1x1x32xf32> to vector<2x16x32xf32>
    %69 = arith.mulf %64, %68 : vector<2x16x32xf32>
    %c0_64 = arith.constant 0 : index
    %c0_65 = arith.constant 0 : index
    %c0_66 = arith.constant 0 : index
    %70 = vector.load %arg7[%c0_64, %c0_65, %c0_66] : memref<3x1x32xf32, #tpu.memory_space<vmem>>, vector<1x1x32xf32>
    %71 = vector.shape_cast %70 : vector<1x1x32xf32> to vector<1x32xf32>
    %72 = vector.shape_cast %71 : vector<1x32xf32> to vector<1x1x32xf32>
    %73 = vector.broadcast %72 : vector<1x1x32xf32> to vector<2x16x32xf32>
    %74 = arith.addf %69, %73 : vector<2x16x32xf32>
    %cst_67 = arith.constant 0.000000e+00 : f32
    %75 = vector.broadcast %cst_67 : f32 to vector<2x16x32xf32>
    %76 = arith.cmpf ogt, %74, %75 : vector<2x16x32xf32>
    %cst_68 = arith.constant 2.000000e-01 : f32
    %77 = vector.broadcast %cst_68 : f32 to vector<2x16x32xf32>
    %78 = arith.mulf %77, %74 : vector<2x16x32xf32>
    %79 = arith.select %76, %74, %78 : vector<2x16x32xi1>, vector<2x16x32xf32>
    %80 = arith.addf %79, %7 : vector<2x16x32xf32>
    %81 = arith.truncf %80 : vector<2x16x32xf32> to vector<2x16x32xbf16>
    %c0_69 = arith.constant 0 : index
    %c2_70 = arith.constant 2 : index
    %c0_71 = arith.constant 0 : index
    %82 = vector.load %arg9[%c0_69, %c2_70, %c0_71] : memref<2x20x32xbf16, #tpu.memory_space<vmem>>, vector<2x16x32xbf16>
    tpu.vector_store %arg9[%c0_69, %c2_70, %c0_71], %81 {strides = array<i32>} : memref<2x20x32xbf16, #tpu.memory_space<vmem>>, vector<2x16x32xbf16>,
    %c0_72 = arith.constant 0 : index
    %c0_73 = arith.constant 0 : index
    %c0_74 = arith.constant 0 : index
    %83 = vector.load %arg9[%c0_72, %c0_73, %c0_74] : memref<2x20x32xbf16, #tpu.memory_space<vmem>>, vector<2x16x32xbf16>
    %84 = vector.shape_cast %83 : vector<2x16x32xbf16> to vector<32x32xbf16>
    %c1_75 = arith.constant 1 : index
    %c0_76 = arith.constant 0 : index
    %c0_77 = arith.constant 0 : index
    %c0_78 = arith.constant 0 : index
    %85 = vector.load %arg4[%c1_75, %c0_76, %c0_77, %c0_78] : memref<3x5x32x32xbf16, #tpu.memory_space<vmem>>, vector<1x1x32x32xbf16>
    %86 = vector.shape_cast %85 : vector<1x1x32x32xbf16> to vector<32x32xbf16>
    %cst_79 = arith.constant dense<0.000000e+00> : vector<32x32xf32>
    %87 = tpu.matmul %84, %86, %cst_79 {dimension_numbers = #tpu.dot_dimension_numbers<[1], [0], [0], [1], [0, 0, 1, 1], [], []>} : vector<32x32xbf16>, vector<32x32xbf16>, vector<32x32xf32> -> vector<32x32xf32>
    %c0_80 = arith.constant 0 : index
    %c1_81 = arith.constant 1 : index
    %c0_82 = arith.constant 0 : index
    %88 = vector.load %arg9[%c0_80, %c1_81, %c0_82] : memref<2x20x32xbf16, #tpu.memory_space<vmem>>, vector<2x16x32xbf16>
    %89 = vector.shape_cast %88 : vector<2x16x32xbf16> to vector<32x32xbf16>
    %c1_83 = arith.constant 1 : index
    %c1_84 = arith.constant 1 : index
    %c0_85 = arith.constant 0 : index
    %c0_86 = arith.constant 0 : index
    %90 = vector.load %arg4[%c1_83, %c1_84, %c0_85, %c0_86] : memref<3x5x32x32xbf16, #tpu.memory_space<vmem>>, vector<1x1x32x32xbf16>
    %91 = vector.shape_cast %90 : vector<1x1x32x32xbf16> to vector<32x32xbf16>
    %cst_87 = arith.constant dense<0.000000e+00> : vector<32x32xf32>
    %92 = tpu.matmul %89, %91, %cst_87 {dimension_numbers = #tpu.dot_dimension_numbers<[1], [0], [0], [1], [0, 0, 1, 1], [], []>} : vector<32x32xbf16>, vector<32x32xbf16>, vector<32x32xf32> -> vector<32x32xf32>
    %93 = arith.addf %87, %92 : vector<32x32xf32>
    %c0_88 = arith.constant 0 : index
    %c2_89 = arith.constant 2 : index
    %c0_90 = arith.constant 0 : index
    %94 = vector.load %arg9[%c0_88, %c2_89, %c0_90] : memref<2x20x32xbf16, #tpu.memory_space<vmem>>, vector<2x16x32xbf16>
    %95 = vector.shape_cast %94 : vector<2x16x32xbf16> to vector<32x32xbf16>
    %c1_91 = arith.constant 1 : index
    %c2_92 = arith.constant 2 : index
    %c0_93 = arith.constant 0 : index
    %c0_94 = arith.constant 0 : index
    %96 = vector.load %arg4[%c1_91, %c2_92, %c0_93, %c0_94] : memref<3x5x32x32xbf16, #tpu.memory_space<vmem>>, vector<1x1x32x32xbf16>
    %97 = vector.shape_cast %96 : vector<1x1x32x32xbf16> to vector<32x32xbf16>
    %cst_95 = arith.constant dense<0.000000e+00> : vector<32x32xf32>
    %98 = tpu.matmul %95, %97, %cst_95 {dimension_numbers = #tpu.dot_dimension_numbers<[1], [0], [0], [1], [0, 0, 1, 1], [], []>} : vector<32x32xbf16>, vector<32x32xbf16>, vector<32x32xf32> -> vector<32x32xf32>
    %99 = arith.addf %93, %98 : vector<32x32xf32>
    %c0_96 = arith.constant 0 : index
    %c3_97 = arith.constant 3 : index
    %c0_98 = arith.constant 0 : index
    %100 = vector.load %arg9[%c0_96, %c3_97, %c0_98] : memref<2x20x32xbf16, #tpu.memory_space<vmem>>, vector<2x16x32xbf16>
    %101 = vector.shape_cast %100 : vector<2x16x32xbf16> to vector<32x32xbf16>
    %c1_99 = arith.constant 1 : index
    %c3_100 = arith.constant 3 : index
    %c0_101 = arith.constant 0 : index
    %c0_102 = arith.constant 0 : index
    %102 = vector.load %arg4[%c1_99, %c3_100, %c0_101, %c0_102] : memref<3x5x32x32xbf16, #tpu.memory_space<vmem>>, vector<1x1x32x32xbf16>
    %103 = vector.shape_cast %102 : vector<1x1x32x32xbf16> to vector<32x32xbf16>
    %cst_103 = arith.constant dense<0.000000e+00> : vector<32x32xf32>
    %104 = tpu.matmul %101, %103, %cst_103 {dimension_numbers = #tpu.dot_dimension_numbers<[1], [0], [0], [1], [0, 0, 1, 1], [], []>} : vector<32x32xbf16>, vector<32x32xbf16>, vector<32x32xf32> -> vector<32x32xf32>
    %105 = arith.addf %99, %104 : vector<32x32xf32>
    %c0_104 = arith.constant 0 : index
    %c4_105 = arith.constant 4 : index
    %c0_106 = arith.constant 0 : index
    %106 = vector.load %arg9[%c0_104, %c4_105, %c0_106] : memref<2x20x32xbf16, #tpu.memory_space<vmem>>, vector<2x16x32xbf16>
    %107 = vector.shape_cast %106 : vector<2x16x32xbf16> to vector<32x32xbf16>
    %c1_107 = arith.constant 1 : index
    %c4_108 = arith.constant 4 : index
    %c0_109 = arith.constant 0 : index
    %c0_110 = arith.constant 0 : index
    %108 = vector.load %arg4[%c1_107, %c4_108, %c0_109, %c0_110] : memref<3x5x32x32xbf16, #tpu.memory_space<vmem>>, vector<1x1x32x32xbf16>
    %109 = vector.shape_cast %108 : vector<1x1x32x32xbf16> to vector<32x32xbf16>
    %cst_111 = arith.constant dense<0.000000e+00> : vector<32x32xf32>
    %110 = tpu.matmul %107, %109, %cst_111 {dimension_numbers = #tpu.dot_dimension_numbers<[1], [0], [0], [1], [0, 0, 1, 1], [], []>} : vector<32x32xbf16>, vector<32x32xbf16>, vector<32x32xf32> -> vector<32x32xf32>
    %111 = arith.addf %105, %110 : vector<32x32xf32>
    %112 = vector.shape_cast %111 : vector<32x32xf32> to vector<2x16x32xf32>
    %c1_112 = arith.constant 1 : index
    %c0_113 = arith.constant 0 : index
    %c0_114 = arith.constant 0 : index
    %113 = vector.load %arg5[%c1_112, %c0_113, %c0_114] : memref<3x1x32xf32, #tpu.memory_space<vmem>>, vector<1x1x32xf32>
    %114 = vector.shape_cast %113 : vector<1x1x32xf32> to vector<1x32xf32>
    %115 = vector.shape_cast %114 : vector<1x32xf32> to vector<1x1x32xf32>
    %116 = vector.broadcast %115 : vector<1x1x32xf32> to vector<2x16x32xf32>
    %117 = arith.addf %112, %116 : vector<2x16x32xf32>
    %cst_115 = arith.constant dense<0.000000e+00> : vector<2x32xf32>
    %118 = vector.multi_reduction <add>, %117, %cst_115 [1] : vector<2x16x32xf32> to vector<2x32xf32>
    %119 = vector.shape_cast %118 : vector<2x32xf32> to vector<2x1x32xf32>
    %cst_116 = arith.constant 1.600000e+01 : f32
    %120 = vector.broadcast %cst_116 : f32 to vector<2x1x32xf32>
    %121 = arith.divf %119, %120 : vector<2x1x32xf32>
    %122 = vector.broadcast %121 : vector<2x1x32xf32> to vector<2x16x32xf32>
    %123 = arith.subf %117, %122 : vector<2x16x32xf32>
    %124 = arith.mulf %123, %123 : vector<2x16x32xf32>
    %cst_117 = arith.constant dense<0.000000e+00> : vector<2x32xf32>
    %125 = vector.multi_reduction <add>, %124, %cst_117 [1] : vector<2x16x32xf32> to vector<2x32xf32>
    %126 = vector.shape_cast %125 : vector<2x32xf32> to vector<2x1x32xf32>
    %cst_118 = arith.constant 1.600000e+01 : f32
    %127 = vector.broadcast %cst_118 : f32 to vector<2x1x32xf32>
    %128 = arith.divf %126, %127 : vector<2x1x32xf32>
    %cst_119 = arith.constant 9.99999974E-6 : f32
    %129 = vector.broadcast %cst_119 : f32 to vector<2x1x32xf32>
    %130 = arith.addf %128, %129 : vector<2x1x32xf32>
    %131 = math.rsqrt %130 : vector<2x1x32xf32>
    %132 = vector.broadcast %131 : vector<2x1x32xf32> to vector<2x16x32xf32>
    %133 = arith.mulf %123, %132 : vector<2x16x32xf32>
    %c1_120 = arith.constant 1 : index
    %c0_121 = arith.constant 0 : index
    %c0_122 = arith.constant 0 : index
    %134 = vector.load %arg6[%c1_120, %c0_121, %c0_122] : memref<3x1x32xf32, #tpu.memory_space<vmem>>, vector<1x1x32xf32>
    %135 = vector.shape_cast %134 : vector<1x1x32xf32> to vector<1x32xf32>
    %136 = vector.shape_cast %135 : vector<1x32xf32> to vector<1x1x32xf32>
    %137 = vector.broadcast %136 : vector<1x1x32xf32> to vector<2x16x32xf32>
    %138 = arith.mulf %133, %137 : vector<2x16x32xf32>
    %c1_123 = arith.constant 1 : index
    %c0_124 = arith.constant 0 : index
    %c0_125 = arith.constant 0 : index
    %139 = vector.load %arg7[%c1_123, %c0_124, %c0_125] : memref<3x1x32xf32, #tpu.memory_space<vmem>>, vector<1x1x32xf32>
    %140 = vector.shape_cast %139 : vector<1x1x32xf32> to vector<1x32xf32>
    %141 = vector.shape_cast %140 : vector<1x32xf32> to vector<1x1x32xf32>
    %142 = vector.broadcast %141 : vector<1x1x32xf32> to vector<2x16x32xf32>
    %143 = arith.addf %138, %142 : vector<2x16x32xf32>
    %cst_126 = arith.constant 0.000000e+00 : f32
    %144 = vector.broadcast %cst_126 : f32 to vector<2x16x32xf32>
    %145 = arith.cmpf ogt, %143, %144 : vector<2x16x32xf32>
    %cst_127 = arith.constant 2.000000e-01 : f32
    %146 = vector.broadcast %cst_127 : f32 to vector<2x16x32xf32>
    %147 = arith.mulf %146, %143 : vector<2x16x32xf32>
    %148 = arith.select %145, %143, %147 : vector<2x16x32xi1>, vector<2x16x32xf32>
    %149 = arith.addf %148, %80 : vector<2x16x32xf32>
    %150 = arith.truncf %149 : vector<2x16x32xf32> to vector<2x16x32xbf16>
    %c0_128 = arith.constant 0 : index
    %c2_129 = arith.constant 2 : index
    %c0_130 = arith.constant 0 : index
    %151 = vector.load %arg9[%c0_128, %c2_129, %c0_130] : memref<2x20x32xbf16, #tpu.memory_space<vmem>>, vector<2x16x32xbf16>
    tpu.vector_store %arg9[%c0_128, %c2_129, %c0_130], %150 {strides = array<i32>} : memref<2x20x32xbf16, #tpu.memory_space<vmem>>, vector<2x16x32xbf16>,
    %c0_131 = arith.constant 0 : index
    %c0_132 = arith.constant 0 : index
    %c0_133 = arith.constant 0 : index
    %152 = vector.load %arg9[%c0_131, %c0_132, %c0_133] : memref<2x20x32xbf16, #tpu.memory_space<vmem>>, vector<2x16x32xbf16>
    %153 = vector.shape_cast %152 : vector<2x16x32xbf16> to vector<32x32xbf16>
    %c2_134 = arith.constant 2 : index
    %c0_135 = arith.constant 0 : index
    %c0_136 = arith.constant 0 : index
    %c0_137 = arith.constant 0 : index
    %154 = vector.load %arg4[%c2_134, %c0_135, %c0_136, %c0_137] : memref<3x5x32x32xbf16, #tpu.memory_space<vmem>>, vector<1x1x32x32xbf16>
    %155 = vector.shape_cast %154 : vector<1x1x32x32xbf16> to vector<32x32xbf16>
    %cst_138 = arith.constant dense<0.000000e+00> : vector<32x32xf32>
    %156 = tpu.matmul %153, %155, %cst_138 {dimension_numbers = #tpu.dot_dimension_numbers<[1], [0], [0], [1], [0, 0, 1, 1], [], []>} : vector<32x32xbf16>, vector<32x32xbf16>, vector<32x32xf32> -> vector<32x32xf32>
    %c0_139 = arith.constant 0 : index
    %c1_140 = arith.constant 1 : index
    %c0_141 = arith.constant 0 : index
    %157 = vector.load %arg9[%c0_139, %c1_140, %c0_141] : memref<2x20x32xbf16, #tpu.memory_space<vmem>>, vector<2x16x32xbf16>
    %158 = vector.shape_cast %157 : vector<2x16x32xbf16> to vector<32x32xbf16>
    %c2_142 = arith.constant 2 : index
    %c1_143 = arith.constant 1 : index
    %c0_144 = arith.constant 0 : index
    %c0_145 = arith.constant 0 : index
    %159 = vector.load %arg4[%c2_142, %c1_143, %c0_144, %c0_145] : memref<3x5x32x32xbf16, #tpu.memory_space<vmem>>, vector<1x1x32x32xbf16>
    %160 = vector.shape_cast %159 : vector<1x1x32x32xbf16> to vector<32x32xbf16>
    %cst_146 = arith.constant dense<0.000000e+00> : vector<32x32xf32>
    %161 = tpu.matmul %158, %160, %cst_146 {dimension_numbers = #tpu.dot_dimension_numbers<[1], [0], [0], [1], [0, 0, 1, 1], [], []>} : vector<32x32xbf16>, vector<32x32xbf16>, vector<32x32xf32> -> vector<32x32xf32>
    %162 = arith.addf %156, %161 : vector<32x32xf32>
    %c0_147 = arith.constant 0 : index
    %c2_148 = arith.constant 2 : index
    %c0_149 = arith.constant 0 : index
    %163 = vector.load %arg9[%c0_147, %c2_148, %c0_149] : memref<2x20x32xbf16, #tpu.memory_space<vmem>>, vector<2x16x32xbf16>
    %164 = vector.shape_cast %163 : vector<2x16x32xbf16> to vector<32x32xbf16>
    %c2_150 = arith.constant 2 : index
    %c2_151 = arith.constant 2 : index
    %c0_152 = arith.constant 0 : index
    %c0_153 = arith.constant 0 : index
    %165 = vector.load %arg4[%c2_150, %c2_151, %c0_152, %c0_153] : memref<3x5x32x32xbf16, #tpu.memory_space<vmem>>, vector<1x1x32x32xbf16>
    %166 = vector.shape_cast %165 : vector<1x1x32x32xbf16> to vector<32x32xbf16>
    %cst_154 = arith.constant dense<0.000000e+00> : vector<32x32xf32>
    %167 = tpu.matmul %164, %166, %cst_154 {dimension_numbers = #tpu.dot_dimension_numbers<[1], [0], [0], [1], [0, 0, 1, 1], [], []>} : vector<32x32xbf16>, vector<32x32xbf16>, vector<32x32xf32> -> vector<32x32xf32>
    %168 = arith.addf %162, %167 : vector<32x32xf32>
    %c0_155 = arith.constant 0 : index
    %c3_156 = arith.constant 3 : index
    %c0_157 = arith.constant 0 : index
    %169 = vector.load %arg9[%c0_155, %c3_156, %c0_157] : memref<2x20x32xbf16, #tpu.memory_space<vmem>>, vector<2x16x32xbf16>
    %170 = vector.shape_cast %169 : vector<2x16x32xbf16> to vector<32x32xbf16>
    %c2_158 = arith.constant 2 : index
    %c3_159 = arith.constant 3 : index
    %c0_160 = arith.constant 0 : index
    %c0_161 = arith.constant 0 : index
    %171 = vector.load %arg4[%c2_158, %c3_159, %c0_160, %c0_161] : memref<3x5x32x32xbf16, #tpu.memory_space<vmem>>, vector<1x1x32x32xbf16>
    %172 = vector.shape_cast %171 : vector<1x1x32x32xbf16> to vector<32x32xbf16>
    %cst_162 = arith.constant dense<0.000000e+00> : vector<32x32xf32>
    %173 = tpu.matmul %170, %172, %cst_162 {dimension_numbers = #tpu.dot_dimension_numbers<[1], [0], [0], [1], [0, 0, 1, 1], [], []>} : vector<32x32xbf16>, vector<32x32xbf16>, vector<32x32xf32> -> vector<32x32xf32>
    %174 = arith.addf %168, %173 : vector<32x32xf32>
    %c0_163 = arith.constant 0 : index
    %c4_164 = arith.constant 4 : index
    %c0_165 = arith.constant 0 : index
    %175 = vector.load %arg9[%c0_163, %c4_164, %c0_165] : memref<2x20x32xbf16, #tpu.memory_space<vmem>>, vector<2x16x32xbf16>
    %176 = vector.shape_cast %175 : vector<2x16x32xbf16> to vector<32x32xbf16>
    %c2_166 = arith.constant 2 : index
    %c4_167 = arith.constant 4 : index
    %c0_168 = arith.constant 0 : index
    %c0_169 = arith.constant 0 : index
    %177 = vector.load %arg4[%c2_166, %c4_167, %c0_168, %c0_169] : memref<3x5x32x32xbf16, #tpu.memory_space<vmem>>, vector<1x1x32x32xbf16>
    %178 = vector.shape_cast %177 : vector<1x1x32x32xbf16> to vector<32x32xbf16>
    %cst_170 = arith.constant dense<0.000000e+00> : vector<32x32xf32>
    %179 = tpu.matmul %176, %178, %cst_170 {dimension_numbers = #tpu.dot_dimension_numbers<[1], [0], [0], [1], [0, 0, 1, 1], [], []>} : vector<32x32xbf16>, vector<32x32xbf16>, vector<32x32xf32> -> vector<32x32xf32>
    %180 = arith.addf %174, %179 : vector<32x32xf32>
    %181 = vector.shape_cast %180 : vector<32x32xf32> to vector<2x16x32xf32>
    %c2_171 = arith.constant 2 : index
    %c0_172 = arith.constant 0 : index
    %c0_173 = arith.constant 0 : index
    %182 = vector.load %arg5[%c2_171, %c0_172, %c0_173] : memref<3x1x32xf32, #tpu.memory_space<vmem>>, vector<1x1x32xf32>
    %183 = vector.shape_cast %182 : vector<1x1x32xf32> to vector<1x32xf32>
    %184 = vector.shape_cast %183 : vector<1x32xf32> to vector<1x1x32xf32>
    %185 = vector.broadcast %184 : vector<1x1x32xf32> to vector<2x16x32xf32>
    %186 = arith.addf %181, %185 : vector<2x16x32xf32>
    %cst_174 = arith.constant dense<0.000000e+00> : vector<2x32xf32>
    %187 = vector.multi_reduction <add>, %186, %cst_174 [1] : vector<2x16x32xf32> to vector<2x32xf32>
    %188 = vector.shape_cast %187 : vector<2x32xf32> to vector<2x1x32xf32>
    %cst_175 = arith.constant 1.600000e+01 : f32
    %189 = vector.broadcast %cst_175 : f32 to vector<2x1x32xf32>
    %190 = arith.divf %188, %189 : vector<2x1x32xf32>
    %191 = vector.broadcast %190 : vector<2x1x32xf32> to vector<2x16x32xf32>
    %192 = arith.subf %186, %191 : vector<2x16x32xf32>
    %193 = arith.mulf %192, %192 : vector<2x16x32xf32>
    %cst_176 = arith.constant dense<0.000000e+00> : vector<2x32xf32>
    %194 = vector.multi_reduction <add>, %193, %cst_176 [1] : vector<2x16x32xf32> to vector<2x32xf32>
    %195 = vector.shape_cast %194 : vector<2x32xf32> to vector<2x1x32xf32>
    %cst_177 = arith.constant 1.600000e+01 : f32
    %196 = vector.broadcast %cst_177 : f32 to vector<2x1x32xf32>
    %197 = arith.divf %195, %196 : vector<2x1x32xf32>
    %cst_178 = arith.constant 9.99999974E-6 : f32
    %198 = vector.broadcast %cst_178 : f32 to vector<2x1x32xf32>
    %199 = arith.addf %197, %198 : vector<2x1x32xf32>
    %200 = math.rsqrt %199 : vector<2x1x32xf32>
    %201 = vector.broadcast %200 : vector<2x1x32xf32> to vector<2x16x32xf32>
    %202 = arith.mulf %192, %201 : vector<2x16x32xf32>
    %c2_179 = arith.constant 2 : index
    %c0_180 = arith.constant 0 : index
    %c0_181 = arith.constant 0 : index
    %203 = vector.load %arg6[%c2_179, %c0_180, %c0_181] : memref<3x1x32xf32, #tpu.memory_space<vmem>>, vector<1x1x32xf32>
    %204 = vector.shape_cast %203 : vector<1x1x32xf32> to vector<1x32xf32>
    %205 = vector.shape_cast %204 : vector<1x32xf32> to vector<1x1x32xf32>
    %206 = vector.broadcast %205 : vector<1x1x32xf32> to vector<2x16x32xf32>
    %207 = arith.mulf %202, %206 : vector<2x16x32xf32>
    %c2_182 = arith.constant 2 : index
    %c0_183 = arith.constant 0 : index
    %c0_184 = arith.constant 0 : index
    %208 = vector.load %arg7[%c2_182, %c0_183, %c0_184] : memref<3x1x32xf32, #tpu.memory_space<vmem>>, vector<1x1x32xf32>
    %209 = vector.shape_cast %208 : vector<1x1x32xf32> to vector<1x32xf32>
    %210 = vector.shape_cast %209 : vector<1x32xf32> to vector<1x1x32xf32>
    %211 = vector.broadcast %210 : vector<1x1x32xf32> to vector<2x16x32xf32>
    %212 = arith.addf %207, %211 : vector<2x16x32xf32>
    %cst_185 = arith.constant 0.000000e+00 : f32
    %213 = vector.broadcast %cst_185 : f32 to vector<2x16x32xf32>
    %214 = arith.cmpf ogt, %212, %213 : vector<2x16x32xf32>
    %cst_186 = arith.constant 2.000000e-01 : f32
    %215 = vector.broadcast %cst_186 : f32 to vector<2x16x32xf32>
    %216 = arith.mulf %215, %212 : vector<2x16x32xf32>
    %217 = arith.select %214, %212, %216 : vector<2x16x32xi1>, vector<2x16x32xf32>
    %218 = arith.addf %217, %149 : vector<2x16x32xf32>
    %cst_187 = arith.constant dense<0.000000e+00> : vector<2x16xf32>
    %219 = vector.multi_reduction <add>, %218, %cst_187 [2] : vector<2x16x32xf32> to vector<2x16xf32>
    %cst_188 = arith.constant dense<0.000000e+00> : vector<2xf32>
    %220 = vector.multi_reduction <add>, %219, %cst_188 [1] : vector<2x16xf32> to vector<2xf32>
    %221 = vector.shape_cast %220 : vector<2xf32> to vector<2x1xf32>
    %cst_189 = arith.constant 0.001953125 : f32
    %222 = vector.broadcast %cst_189 : f32 to vector<2x1xf32>
    %223 = arith.mulf %221, %222 : vector<2x1xf32>
    %c0_190 = arith.constant 0 : index
    %c0_191 = arith.constant 0 : index
    %224 = vector.load %arg8[%c0_190, %c0_191] : memref<2x1xf32, #tpu.memory_space<vmem>>, vector<2x1xf32>
    tpu.vector_store %arg8[%c0_190, %c0_191], %223 {strides = array<i32>} : memref<2x1xf32, #tpu.memory_space<vmem>>, vector<2x1xf32>,
    return
  }
  func.func @transform_0(%arg0: i32) -> (i32, i32, i32) {
    %c0_i32 = arith.constant 0 : i32
    %c0_i32_0 = arith.constant 0 : i32
    %c0_i32_1 = arith.constant 0 : i32
    return %arg0, %c0_i32, %c0_i32_0 : i32, i32, i32
  }
  func.func @transform_1(%arg0: i32) -> (i32, i32, i32) {
    %c0_i32 = arith.constant 0 : i32
    %c0_i32_0 = arith.constant 0 : i32
    %c0_i32_1 = arith.constant 0 : i32
    return %arg0, %c0_i32, %c0_i32_0 : i32, i32, i32
  }
  func.func @transform_2(%arg0: i32) -> (i32, i32) {
    %c0_i32 = arith.constant 0 : i32
    %c0_i32_0 = arith.constant 0 : i32
    %c0_i32_1 = arith.constant 0 : i32
    return %c0_i32, %c0_i32_0 : i32, i32
  }
  func.func @transform_3(%arg0: i32) -> (i32, i32, i32, i32) {
    %c0_i32 = arith.constant 0 : i32
    %c0_i32_0 = arith.constant 0 : i32
    %c0_i32_1 = arith.constant 0 : i32
    %c0_i32_2 = arith.constant 0 : i32
    %c0_i32_3 = arith.constant 0 : i32
    return %c0_i32, %c0_i32_0, %c0_i32_1, %c0_i32_2 : i32, i32, i32, i32
  }
  func.func @transform_4(%arg0: i32) -> (i32, i32, i32) {
    %c0_i32 = arith.constant 0 : i32
    %c0_i32_0 = arith.constant 0 : i32
    %c0_i32_1 = arith.constant 0 : i32
    %c0_i32_2 = arith.constant 0 : i32
    return %c0_i32, %c0_i32_0, %c0_i32_1 : i32, i32, i32
  }
  func.func @transform_5(%arg0: i32) -> (i32, i32, i32) {
    %c0_i32 = arith.constant 0 : i32
    %c0_i32_0 = arith.constant 0 : i32
    %c0_i32_1 = arith.constant 0 : i32
    %c0_i32_2 = arith.constant 0 : i32
    return %c0_i32, %c0_i32_0, %c0_i32_1 : i32, i32, i32
  }
  func.func @transform_6(%arg0: i32) -> (i32, i32, i32) {
    %c0_i32 = arith.constant 0 : i32
    %c0_i32_0 = arith.constant 0 : i32
    %c0_i32_1 = arith.constant 0 : i32
    %c0_i32_2 = arith.constant 0 : i32
    return %c0_i32, %c0_i32_0, %c0_i32_1 : i32, i32, i32
  }
  func.func @transform_7(%arg0: i32) -> (i32, i32) {
    %c0_i32 = arith.constant 0 : i32
    %c0_i32_0 = arith.constant 0 : i32
    return %arg0, %c0_i32 : i32, i32
  }
}

</mosaic_0001>

<llo_original>
// kernel: tpu_custom_call.1
$region0: #{tpu_custom_call.1}
  #allocation0 [shape = 'u32[]', space=smem, size = 0x4, offset = 0x4, fixed_abs, tag = 'smem constant byte address 0x4 - core index']
  #allocation1 [shape = 'u32[72,128]{1,0:T(1,128)}', space=vmem, size = 0x9000, scoped, tag = 'internal scratch']
  #allocation2 [shape = 'bf16[2,20,32]{2,1,0:T(8,128)(2,1)}', space=vmem, size = 0x3000, scoped, tag = 'scratch operand']
  %s0 = inlined_call_operand.vmem [shape: bf16[2,16,8], index: 0, kind: input, shape index: {}]
  %s1 = inlined_call_operand.vmem [shape: f32[2,1,32], index: 1, kind: input, shape index: {}]
  %s2 = inlined_call_operand.vmem [shape: bf16[8,32], index: 2, kind: input, shape index: {}]
  %s3 = inlined_call_operand.hbm [shape: bf16[3,5,32,32], index: 3, kind: input, shape index: {}]
  %s4 = inlined_call_operand.vmem [shape: f32[3,1,32], index: 4, kind: input, shape index: {}]
  %s5 = inlined_call_operand.vmem [shape: f32[3,1,32], index: 5, kind: input, shape index: {}]
  %s6 = inlined_call_operand.vmem [shape: f32[3,1,32], index: 6, kind: input, shape index: {}]
  %s7 = inlined_call_operand.vmem [shape: f32[2,1], index: 7, kind: output, shape index: {}]
  %s8 = sld [smem:[#allocation0]]
  $region42: #{tpu_custom_call.1} parent=0
    _
  %s10 = ssub.s32 1, %s8
  %s11 = scalar_select 0, %s10, %s8
  $region1: #{tpu_custom_call.1} parent=0
    #allocation3 [shape = 'u8[122880]{0}', space=vmem, size = 0x1e000, scoped, tag = 'input window, operand 3, single buffered']
    #allocation4 [shape = 's32[1]{0}', space=sflag, size = 0x4, scoped, tag = 'scoped memory for tpu_custom_call.1']
    %12 = vsyncpa [#allocation4], 0
    // Predicated region
    $region2: #{tpu_custom_call.1} parent=1 // pred_check
      _
    $region3: #{tpu_custom_call.1} parent=1 // pred_check_branch
      %14 = sbr.rel (0) target = $region5
    $region4: #{tpu_custom_call.1} parent=1 // pred_region
      _
    $region5: #{tpu_custom_call.1} parent=1 // pred_fallthru
      _
    // Predicated region
    $region6: #{tpu_custom_call.1} parent=1 // pred_check
      _
    $region7: #{tpu_custom_call.1} parent=1 // pred_check_branch
      %16 = sbr.rel (0) target = $region9
    $region8: #{tpu_custom_call.1} parent=1 // pred_region
      _
    $region9: #{tpu_custom_call.1} parent=1 // pred_fallthru
      _
    // Predicated region
    $region10: #{tpu_custom_call.1} parent=1 // pred_check
      _
    $region11: #{tpu_custom_call.1} parent=1 // pred_check_branch
      %18 = sbr.rel (0) target = $region13
    $region12: #{tpu_custom_call.1} parent=1 // pred_region
      _
    $region13: #{tpu_custom_call.1} parent=1 // pred_fallthru
      _
    // Predicated region
    $region14: #{tpu_custom_call.1} parent=1 // pred_check
      _
    $region15: #{tpu_custom_call.1} parent=1 // pred_check_branch
      %20 = sbr.rel (0) target = $region17
    $region16: #{tpu_custom_call.1} parent=1 // pred_region
      %22 = vsyncadd [#allocation4], 0
      %s23 = sshll.u32 %s3, 4
      %s24 = int_to_ptr.hbm [resolvable:$true] %s23
      %s25 = sshll.u32 [#allocation3], 4
      %s26 = int_to_ptr.vmem [resolvable:$true] %s25
      %31 = dma.hbm_to_vmem [thread:$0]  %s24, 3840, %s26, [#allocation4], 64, 64, 4
    $region17: #{tpu_custom_call.1} parent=1 // pred_fallthru
      _
    // Predicated region
    $region18: #{tpu_custom_call.1} parent=1 // pred_check
      _
    $region19: #{tpu_custom_call.1} parent=1 // pred_check_branch
      %33 = sbr.rel (0) target = $region21
    $region20: #{tpu_custom_call.1} parent=1 // pred_region
      _
    $region21: #{tpu_custom_call.1} parent=1 // pred_fallthru
      _
    // Predicated region
    $region22: #{tpu_custom_call.1} parent=1 // pred_check
      _
    $region23: #{tpu_custom_call.1} parent=1 // pred_check_branch
      %35 = sbr.rel (0) target = $region25
    $region24: #{tpu_custom_call.1} parent=1 // pred_region
      _
    $region25: #{tpu_custom_call.1} parent=1 // pred_fallthru
      _
    // Predicated region
    $region26: #{tpu_custom_call.1} parent=1 // pred_check
      _
    $region27: #{tpu_custom_call.1} parent=1 // pred_check_branch
      %37 = sbr.rel (0) target = $region29
    $region28: #{tpu_custom_call.1} parent=1 // pred_region
      _
    $region29: #{tpu_custom_call.1} parent=1 // pred_fallthru
      _
    // Predicated region
    $region30: #{tpu_custom_call.1} parent=1 // pred_check
      _
    $region31: #{tpu_custom_call.1} parent=1 // pred_check_branch
      %39 = sbr.rel (0) target = $region33
    $region32: #{tpu_custom_call.1} parent=1 // pred_region
      %41 = dma.done [#allocation4], 3840
    $region33: #{tpu_custom_call.1} parent=1 // pred_fallthru
      _
    %v43 = vld [vmem:[%s0] sm:$0xf]
    %v44 = vld [vmem:[%s0 + $0x4] sm:$0xf]
    %v45 = vld [vmem:[%s0 + $0x8] sm:$0xf]
    %v46 = vld [vmem:[%s0 + $0xc] sm:$0xf]
    %v47 = vld [vmem:[%s2] sm:$0xf]
    %v52 = vunpack.c.l.b16 %v43
    %v53 = vunpack.c.l.b16 %v44
    %v54 = vunpack.c.l.b16 %v45
    %v55 = vunpack.c.l.b16 %v46
    %v56 = vpack.c.b16 %v53, %v52
    %v57 = vpack.c.b16 %v55, %v54
    %vm58 = vcmask 64512
    %v60 = vsel %vm58, %v56, 0
    %v63 = vsel %vm58, %v57, 0
    %vm65 = vcmask 1043456
    %v67 = vsel %vm65, %v47, 0
    %69 = vmatpush.bf16.msra.mxu0 0
    %70 = vmatpush.bf16.msra.mxu0 0
    %71 = vmatpush.bf16.msra.mxu0 0
    %72 = vmatpush.bf16.msra.mxu0 0
    %73 = vmatpush.bf16.msra.mxu0 0
    %74 = vmatpush.bf16.msra.mxu0 0
    %75 = vmatpush.bf16.msra.mxu0 0
    %76 = vmatpush.bf16.msra.mxu0 %v67
    %77 = vmatmul.bf16.gmra.mxu0 %v60
    %v78 = vpop.f32.mrf.mxu0
    %v79 = vadd.f32 0.0, %v78
    %v80 = vpop.f32.mrf.mxu0
    %v81 = vadd.f32 0.0, %v80
    %82 = vmatmul.bf16.gmra.mxu0 %v63
    %v83 = vpop.f32.mrf.mxu0
    %v84 = vadd.f32 0.0, %v83
    %v85 = vpop.f32.mrf.mxu0
    %v86 = vadd.f32 0.0, %v85
    %87 = vdwg.mxu0
    %v88 = vld [vmem:[%s1] sm:$0x1]
    %v89 = vld [vmem:[%s1 + $0x1] sm:$0x1]
    %v92 = vperm.slane %v88, 0
    %v93 = vperm.slane %v89, 0
    %v96 = vadd.f32 %v79, %v92
    %v97 = vadd.f32 %v81, %v92
    %v98 = vadd.f32 %v84, %v93
    %v99 = vadd.f32 %v86, %v93
    %vm100 = vcmask 253952
    %101 = vst.msk [vmem:[#allocation2] sm:$0x1] %vm100, 0
    %102 = vst.msk [vmem:[#allocation2 + $0xc] sm:$0x1] %vm100, 0
    %vm103 = vcmask 254977
    %104 = vst.msk [vmem:[#allocation2 + $0x8] sm:$0x2] %vm103, 0
    %105 = vst.msk [vmem:[#allocation2 + $0x14] sm:$0x2] %vm103, 0
    %v106 = vpack.c.bf16 %v96, %v96
    %v107 = vpack.c.bf16 %v97, %v97
    %v108 = vpack.c.bf16 %v98, %v98
    %v109 = vpack.c.bf16 %v99, %v99
    %vm114 = vcmask 1040384
    %vm115 = vcmask 1044484
    %vm116 = vmor %vm114, %vm115
    %v117 = vrot.slane %v106, 7
    %v118 = vrot.slane %v117, 4
    %v119 = vrot.slane %v107, 7
    %v120 = vsel %vm116, %v118, %v119
    %v121 = vrot.slane %v119, 4
    %v122 = vrot.slane %v108, 7
    %v123 = vrot.slane %v122, 4
    %v124 = vrot.slane %v109, 7
    %v125 = vsel %vm116, %v123, %v124
    %v126 = vrot.slane %v124, 4
    %vm133 = vcmask 257025
    %134 = vst.msk [vmem:[#allocation2] sm:$0xe] %vm133, %v117
    %vm135 = vcmask 257024
    %136 = vst.msk [vmem:[#allocation2 + $0x4] sm:$0xf] %vm135, %v120
    %137 = vst.msk [vmem:[#allocation2 + $0x8] sm:$0x1] %vm100, %v121
    %138 = vst.msk [vmem:[#allocation2 + $0xc] sm:$0xe] %vm133, %v122
    %139 = vst.msk [vmem:[#allocation2 + $0x10] sm:$0xf] %vm135, %v125
    %140 = vst.msk [vmem:[#allocation2 + $0x14] sm:$0x1] %vm100, %v126
    %v141 = vld [vmem:[#allocation2] sm:$0xf]
    %v142 = vld [vmem:[#allocation2 + $0x4] sm:$0xf]
    %v143 = vld [vmem:[#allocation2 + $0xc] sm:$0xf]
    %v144 = vld [vmem:[#allocation2 + $0x10] sm:$0xf]
    %v145 = vld [vmem:[#allocation3] sm:$0xf]
    %v146 = vld [vmem:[#allocation3 + $0x4] sm:$0xf]
    %v147 = vld [vmem:[#allocation3 + $0x8] sm:$0xf]
    %v148 = vld [vmem:[#allocation3 + $0xc] sm:$0xf]
    %v149 = vld [vmem:[#allocation2 + $0x8] sm:$0x1]
    %v150 = vld [vmem:[#allocation2 + $0x14] sm:$0x1]
    %vm151 = vsmask.f32 3328
    %vm152 = vsmask.f32 7440
    %vm153 = vmor %vm151, %vm152
    %v155 = vshrl.u32 %v141, 16
    %v157 = vrot.slane %v155, 4
    %v158 = vshll.u32 %v141, 16
    %v160 = vrot.slane %v158, 5
    %v161 = vor.u32 %v157, %v160
    %v162 = vrot.slane %v161, 4
    %v164 = vshll.u32 %v142, 16
    %v166 = vrot.slane %v164, 5
    %v167 = vsel %vm153, %v162, %v166
    %v168 = vshrl.u32 %v142, 16
    %v170 = vrot.slane %v168, 4
    %v171 = vor.u32 %v170, %v166
    %v172 = vrot.slane %v171, 4
    %v174 = vshll.u32 %v149, 16
    %v176 = vrot.slane %v174, 5
    %v177 = vsel %vm153, %v172, %v176
    %v179 = vshrl.u32 %v143, 16
    %v181 = vrot.slane %v179, 4
    %v182 = vshll.u32 %v143, 16
    %v184 = vrot.slane %v182, 5
    %v185 = vor.u32 %v181, %v184
    %v186 = vrot.slane %v185, 4
    %v188 = vshll.u32 %v144, 16
    %v190 = vrot.slane %v188, 5
    %v191 = vsel %vm153, %v186, %v190
    %v192 = vshrl.u32 %v144, 16
    %v194 = vrot.slane %v192, 4
    %v195 = vor.u32 %v194, %v190
    %v196 = vrot.slane %v195, 4
    %v198 = vshll.u32 %v150, 16
    %v200 = vrot.slane %v198, 5
    %v201 = vsel %vm153, %v196, %v200
    %s202 = scalar_lea.vmem [#allocation3], 16
    %v203 = vld [vmem:[%s202] sm:$0xf]
    %v204 = vld [vmem:[%s202 + $0x4] sm:$0xf]
    %v205 = vld [vmem:[%s202 + $0x8] sm:$0xf]
    %v206 = vld [vmem:[%s202 + $0xc] sm:$0xf]
    %v207 = vunpack.c.l.b16 %v167
    %v208 = vunpack.c.l.b16 %v177
    %v209 = vunpack.c.l.b16 %v191
    %v210 = vunpack.c.l.b16 %v201
    %v211 = vpack.c.b16 %v208, %v207
    %v212 = vpack.c.b16 %v210, %v209
    %v217 = vunpack.c.l.b16 %v203
    %v218 = vunpack.c.l.b16 %v204
    %v219 = vunpack.c.l.b16 %v205
    %v220 = vunpack.c.l.b16 %v206
    %v221 = vpack.c.b16 %v218, %v217
    %v222 = vpack.c.b16 %v220, %v219
    %vm225 = vcmask 261120
    %v227 = vsel %vm225, %v211, 0
    %v230 = vsel %vm225, %v212, 0
    %232 = vmatpush.bf16.msra.mxu0 0
    %233 = vmatpush.bf16.msra.mxu0 0
    %234 = vmatpush.bf16.msra.mxu0 0
    %235 = vmatpush.bf16.msra.mxu0 0
    %236 = vmatpush.bf16.msra.mxu0 0
    %237 = vmatpush.bf16.msra.mxu0 0
    %238 = vmatpush.bf16.msra.mxu0 %v222
    %239 = vmatpush.bf16.msra.mxu0 %v221
    %240 = vmatmul.bf16.gmra.mxu0 %v227
    %v241 = vpop.f32.mrf.mxu0
    %v242 = vadd.f32 0.0, %v241
    %v243 = vpop.f32.mrf.mxu0
    %v244 = vadd.f32 0.0, %v243
    %245 = vmatmul.bf16.gmra.mxu0 %v230
    %v246 = vpop.f32.mrf.mxu0
    %v247 = vadd.f32 0.0, %v246
    %v248 = vpop.f32.mrf.mxu0
    %v249 = vadd.f32 0.0, %v248
    %250 = vdwg.mxu0
    %v255 = vunpack.c.l.b16 %v141
    %v256 = vunpack.c.l.b16 %v142
    %v257 = vunpack.c.l.b16 %v143
    %v258 = vunpack.c.l.b16 %v144
    %v259 = vpack.c.b16 %v256, %v255
    %v260 = vpack.c.b16 %v258, %v257
    %v265 = vunpack.c.l.b16 %v145
    %v266 = vunpack.c.l.b16 %v146
    %v267 = vunpack.c.l.b16 %v147
    %v268 = vunpack.c.l.b16 %v148
    %v269 = vpack.c.b16 %v266, %v265
    %v270 = vpack.c.b16 %v268, %v267
    %v274 = vsel %vm225, %v259, 0
    %v277 = vsel %vm225, %v260, 0
    %279 = vmatpush.bf16.msra.mxu0 0
    %280 = vmatpush.bf16.msra.mxu0 0
    %281 = vmatpush.bf16.msra.mxu0 0
    %282 = vmatpush.bf16.msra.mxu0 0
    %283 = vmatpush.bf16.msra.mxu0 0
    %284 = vmatpush.bf16.msra.mxu0 0
    %285 = vmatpush.bf16.msra.mxu0 %v270
    %286 = vmatpush.bf16.msra.mxu0 %v269
    %287 = vmatmul.bf16.gmra.mxu0 %v274
    %v288 = vpop.f32.mrf.mxu0
    %v289 = vadd.f32 %v242, %v288
    %v290 = vpop.f32.mrf.mxu0
    %v291 = vadd.f32 %v244, %v290
    %292 = vmatmul.bf16.gmra.mxu0 %v277
    %v293 = vpop.f32.mrf.mxu0
    %v294 = vadd.f32 %v247, %v293
    %v295 = vpop.f32.mrf.mxu0
    %v296 = vadd.f32 %v249, %v295
    %297 = vdwg.mxu0
    %v298 = vld [vmem:[#allocation2] sm:$0xe]
    %v299 = vld [vmem:[#allocation2 + $0xc] sm:$0xe]
    %vm304 = vcmask 1042432
    %vm305 = vcmask 1046532
    %vm306 = vmor %vm304, %vm305
    %v307 = vrot.slane %v298, 5
    %v308 = vrot.slane %v307, 4
    %v309 = vrot.slane %v142, 5
    %v310 = vsel %vm306, %v308, %v309
    %v311 = vrot.slane %v309, 4
    %v312 = vrot.slane %v149, 5
    %v313 = vsel %vm306, %v311, %v312
    %v314 = vrot.slane %v299, 5
    %v315 = vrot.slane %v314, 4
    %v316 = vrot.slane %v144, 5
    %v317 = vsel %vm306, %v315, %v316
    %v318 = vrot.slane %v316, 4
    %v319 = vrot.slane %v150, 5
    %v320 = vsel %vm306, %v318, %v319
    %s321 = scalar_lea.vmem [#allocation3], 32
    %v322 = vld [vmem:[%s321] sm:$0xf]
    %v323 = vld [vmem:[%s321 + $0x4] sm:$0xf]
    %v324 = vld [vmem:[%s321 + $0x8] sm:$0xf]
    %v325 = vld [vmem:[%s321 + $0xc] sm:$0xf]
    %v326 = vunpack.c.l.b16 %v310
    %v327 = vunpack.c.l.b16 %v313
    %v328 = vunpack.c.l.b16 %v317
    %v329 = vunpack.c.l.b16 %v320
    %v330 = vpack.c.b16 %v327, %v326
    %v331 = vpack.c.b16 %v329, %v328
    %v336 = vunpack.c.l.b16 %v322
    %v337 = vunpack.c.l.b16 %v323
    %v338 = vunpack.c.l.b16 %v324
    %v339 = vunpack.c.l.b16 %v325
    %v340 = vpack.c.b16 %v337, %v336
    %v341 = vpack.c.b16 %v339, %v338
    %v345 = vsel %vm225, %v330, 0
    %v348 = vsel %vm225, %v331, 0
    %350 = vmatpush.bf16.msra.mxu0 0
    %351 = vmatpush.bf16.msra.mxu0 0
    %352 = vmatpush.bf16.msra.mxu0 0
    %353 = vmatpush.bf16.msra.mxu0 0
    %354 = vmatpush.bf16.msra.mxu0 0
    %355 = vmatpush.bf16.msra.mxu0 0
    %356 = vmatpush.bf16.msra.mxu0 %v341
    %357 = vmatpush.bf16.msra.mxu0 %v340
    %358 = vmatmul.bf16.gmra.mxu0 %v345
    %v359 = vpop.f32.mrf.mxu0
    %v360 = vadd.f32 0.0, %v359
    %v361 = vpop.f32.mrf.mxu0
    %v362 = vadd.f32 0.0, %v361
    %363 = vmatmul.bf16.gmra.mxu0 %v348
    %v364 = vpop.f32.mrf.mxu0
    %v365 = vadd.f32 0.0, %v364
    %v366 = vpop.f32.mrf.mxu0
    %v367 = vadd.f32 0.0, %v366
    %368 = vdwg.mxu0
    %v369 = vadd.f32 %v289, %v360
    %v370 = vadd.f32 %v291, %v362
    %v371 = vadd.f32 %v294, %v365
    %v372 = vadd.f32 %v296, %v367
    %v373 = vld [vmem:[#allocation2 + $0x8] sm:$0x3]
    %v374 = vld [vmem:[#allocation2 + $0x14] sm:$0x3]
    %vm375 = vsmask.f32 2304
    %vm376 = vsmask.f32 6416
    %vm377 = vmor %vm375, %vm376
    %v379 = vshrl.u32 %v298, 16
    %v381 = vrot.slane %v379, 5
    %v382 = vshll.u32 %v298, 16
    %v384 = vrot.slane %v382, 6
    %v385 = vor.u32 %v381, %v384
    %v386 = vrot.slane %v385, 4
    %v387 = vrot.slane %v168, 5
    %v388 = vrot.slane %v164, 6
    %v389 = vor.u32 %v387, %v388
    %v390 = vsel %vm377, %v386, %v389
    %v391 = vrot.slane %v389, 4
    %v393 = vshrl.u32 %v373, 16
    %v395 = vrot.slane %v393, 5
    %v396 = vshll.u32 %v373, 16
    %v398 = vrot.slane %v396, 6
    %v399 = vor.u32 %v395, %v398
    %v400 = vsel %vm377, %v391, %v399
    %v402 = vshrl.u32 %v299, 16
    %v404 = vrot.slane %v402, 5
    %v405 = vshll.u32 %v299, 16
    %v407 = vrot.slane %v405, 6
    %v408 = vor.u32 %v404, %v407
    %v409 = vrot.slane %v408, 4
    %v410 = vrot.slane %v192, 5
    %v411 = vrot.slane %v188, 6
    %v412 = vor.u32 %v410, %v411
    %v413 = vsel %vm377, %v409, %v412
    %v414 = vrot.slane %v412, 4
    %v416 = vshrl.u32 %v374, 16
    %v418 = vrot.slane %v416, 5
    %v419 = vshll.u32 %v374, 16
    %v421 = vrot.slane %v419, 6
    %v422 = vor.u32 %v418, %v421
    %v423 = vsel %vm377, %v414, %v422
    %s424 = scalar_lea.vmem [#allocation3], 48
    %v425 = vld [vmem:[%s424] sm:$0xf]
    %v426 = vld [vmem:[%s424 + $0x4] sm:$0xf]
    %v427 = vld [vmem:[%s424 + $0x8] sm:$0xf]
    %v428 = vld [vmem:[%s424 + $0xc] sm:$0xf]
    %v429 = vunpack.c.l.b16 %v390
    %v430 = vunpack.c.l.b16 %v400
    %v431 = vunpack.c.l.b16 %v413
    %v432 = vunpack.c.l.b16 %v423
    %v433 = vpack.c.b16 %v430, %v429
    %v434 = vpack.c.b16 %v432, %v431
    %v439 = vunpack.c.l.b16 %v425
    %v440 = vunpack.c.l.b16 %v426
    %v441 = vunpack.c.l.b16 %v427
    %v442 = vunpack.c.l.b16 %v428
    %v443 = vpack.c.b16 %v440, %v439
    %v444 = vpack.c.b16 %v442, %v441
    %v448 = vsel %vm225, %v433, 0
    %v451 = vsel %vm225, %v434, 0
    %453 = vmatpush.bf16.msra.mxu0 0
    %454 = vmatpush.bf16.msra.mxu0 0
    %455 = vmatpush.bf16.msra.mxu0 0
    %456 = vmatpush.bf16.msra.mxu0 0
    %457 = vmatpush.bf16.msra.mxu0 0
    %458 = vmatpush.bf16.msra.mxu0 0
    %459 = vmatpush.bf16.msra.mxu0 %v444
    %460 = vmatpush.bf16.msra.mxu0 %v443
    %461 = vmatmul.bf16.gmra.mxu0 %v448
    %v462 = vpop.f32.mrf.mxu0
    %v463 = vadd.f32 0.0, %v462
    %v464 = vpop.f32.mrf.mxu0
    %v465 = vadd.f32 0.0, %v464
    %466 = vmatmul.bf16.gmra.mxu0 %v451
    %v467 = vpop.f32.mrf.mxu0
    %v468 = vadd.f32 0.0, %v467
    %v469 = vpop.f32.mrf.mxu0
    %v470 = vadd.f32 0.0, %v469
    %471 = vdwg.mxu0
    %v472 = vadd.f32 %v369, %v463
    %v473 = vadd.f32 %v370, %v465
    %v474 = vadd.f32 %v371, %v468
    %v475 = vadd.f32 %v372, %v470
    %v476 = vld [vmem:[#allocation2] sm:$0xc]
    %v477 = vld [vmem:[#allocation2 + $0xc] sm:$0xc]
    %vm482 = vcmask 1041408
    %vm483 = vcmask 1045508
    %vm484 = vmor %vm482, %vm483
    %v485 = vrot.slane %v476, 6
    %v486 = vrot.slane %v485, 4
    %v487 = vrot.slane %v142, 6
    %v488 = vsel %vm484, %v486, %v487
    %v489 = vrot.slane %v487, 4
    %v490 = vrot.slane %v373, 6
    %v491 = vsel %vm484, %v489, %v490
    %v492 = vrot.slane %v477, 6
    %v493 = vrot.slane %v492, 4
    %v494 = vrot.slane %v144, 6
    %v495 = vsel %vm484, %v493, %v494
    %v496 = vrot.slane %v494, 4
    %v497 = vrot.slane %v374, 6
    %v498 = vsel %vm484, %v496, %v497
    %s499 = scalar_lea.vmem [#allocation3], 64
    %v500 = vld [vmem:[%s499] sm:$0xf]
    %v501 = vld [vmem:[%s499 + $0x4] sm:$0xf]
    %v502 = vld [vmem:[%s499 + $0x8] sm:$0xf]
    %v503 = vld [vmem:[%s499 + $0xc] sm:$0xf]
    %v504 = vunpack.c.l.b16 %v488
    %v505 = vunpack.c.l.b16 %v491
    %v506 = vunpack.c.l.b16 %v495
    %v507 = vunpack.c.l.b16 %v498
    %v508 = vpack.c.b16 %v505, %v504
    %v509 = vpack.c.b16 %v507, %v506
    %v514 = vunpack.c.l.b16 %v500
    %v515 = vunpack.c.l.b16 %v501
    %v516 = vunpack.c.l.b16 %v502
    %v517 = vunpack.c.l.b16 %v503
    %v518 = vpack.c.b16 %v515, %v514
    %v519 = vpack.c.b16 %v517, %v516
    %v523 = vsel %vm225, %v508, 0
    %v526 = vsel %vm225, %v509, 0
    %528 = vmatpush.bf16.msra.mxu0 0
    %529 = vmatpush.bf16.msra.mxu0 0
    %530 = vmatpush.bf16.msra.mxu0 0
    %531 = vmatpush.bf16.msra.mxu0 0
    %532 = vmatpush.bf16.msra.mxu0 0
    %533 = vmatpush.bf16.msra.mxu0 0
    %534 = vmatpush.bf16.msra.mxu0 %v519
    %535 = vmatpush.bf16.msra.mxu0 %v518
    %536 = vmatmul.bf16.gmra.mxu0 %v523
    %v537 = vpop.f32.mrf.mxu0
    %v538 = vadd.f32 0.0, %v537
    %v539 = vpop.f32.mrf.mxu0
    %v540 = vadd.f32 0.0, %v539
    %541 = vmatmul.bf16.gmra.mxu0 %v526
    %v542 = vpop.f32.mrf.mxu0
    %v543 = vadd.f32 0.0, %v542
    %v544 = vpop.f32.mrf.mxu0
    %v545 = vadd.f32 0.0, %v544
    %546 = vdwg.mxu0
    %v547 = vadd.f32 %v472, %v538
    %v548 = vadd.f32 %v473, %v540
    %v549 = vadd.f32 %v474, %v543
    %v550 = vadd.f32 %v475, %v545
    %v551 = vld [vmem:[%s4] sm:$0x1]
    %v553 = vperm.slane %v551, 0
    %v555 = vadd.f32 %v547, %v553
    %v556 = vadd.f32 %v548, %v553
    %v557 = vadd.f32 %v549, %v553
    %v558 = vadd.f32 %v550, %v553
    %v559 = vsel %vm225, %v555, 0.0
    %v560 = vsel %vm225, %v556, 0.0
    %v561 = vadd.f32 %v559, %v560
    %v562 = vrot.slane %v561, 4
    %v563 = vadd.f32 %v561, %v562
    %v564 = vrot.slane %v563, 2
    %v565 = vadd.f32 %v563, %v564
    %v566 = vrot.slane %v565, 1
    %v567 = vadd.f32 %v565, %v566
    %v568 = vsel %vm225, %v557, 0.0
    %v569 = vsel %vm225, %v558, 0.0
    %v570 = vadd.f32 %v568, %v569
    %v571 = vrot.slane %v570, 4
    %v572 = vadd.f32 %v570, %v571
    %v573 = vrot.slane %v572, 2
    %v574 = vadd.f32 %v572, %v573
    %v575 = vrot.slane %v574, 1
    %v576 = vadd.f32 %v574, %v575
    %v577 = vrcp.pop 16.0
    %v578 = vmul.f32 16.0, %v577
    %v579 = vsub.f32 1.0, %v578
    %v580 = vmul.f32 %v577, %v579
    %v581 = vadd.f32 %v577, %v580
    %vm582 = vweird.f32 %v577
    %v583 = vsel %vm582, %v577, %v581
    %v584 = vmul.f32 %v567, %v583
    %v585 = vmul.f32 %v576, %v583
    %v586 = vsub.f32 %v555, %v584
    %v587 = vsub.f32 %v556, %v584
    %v588 = vsub.f32 %v557, %v585
    %v589 = vsub.f32 %v558, %v585
    %v590 = vmul.f32 %v586, %v586
    %v591 = vmul.f32 %v587, %v587
    %v592 = vmul.f32 %v588, %v588
    %v593 = vmul.f32 %v589, %v589
    %v594 = vsel %vm225, %v590, 0.0
    %v595 = vsel %vm225, %v591, 0.0
    %v596 = vadd.f32 %v594, %v595
    %v597 = vrot.slane %v596, 4
    %v598 = vadd.f32 %v596, %v597
    %v599 = vrot.slane %v598, 2
    %v600 = vadd.f32 %v598, %v599
    %v601 = vrot.slane %v600, 1
    %v602 = vadd.f32 %v600, %v601
    %v603 = vsel %vm225, %v592, 0.0
    %v604 = vsel %vm225, %v593, 0.0
    %v605 = vadd.f32 %v603, %v604
    %v606 = vrot.slane %v605, 4
    %v607 = vadd.f32 %v605, %v606
    %v608 = vrot.slane %v607, 2
    %v609 = vadd.f32 %v607, %v608
    %v610 = vrot.slane %v609, 1
    %v611 = vadd.f32 %v609, %v610
    %v612 = vmul.f32 %v602, %v583
    %v613 = vmul.f32 %v611, %v583
    %v614 = vadd.f32 %v612, 1e-05
    %v615 = vadd.f32 %v613, 1e-05
    %v616 = vrsqrt.pop %v614
    %v617 = vmul.f32 %v616, %v614
    %v618 = vmul.f32 %v617, %v616
    %v619 = vmul.f32 0.5, %v618
    %v620 = vsub.f32 1.5, %v619
    %v621 = vmul.f32 %v616, %v620
    %vm622 = vweird.f32 %v614
    %vm623 = vweird.f32 %v616
    %vm624 = vmor %vm622, %vm623
    %v625 = vsel %vm624, %v616, %v621
    %v626 = vrsqrt.pop %v615
    %v627 = vmul.f32 %v626, %v615
    %v628 = vmul.f32 %v627, %v626
    %v629 = vmul.f32 0.5, %v628
    %v630 = vsub.f32 1.5, %v629
    %v631 = vmul.f32 %v626, %v630
    %vm632 = vweird.f32 %v615
    %vm633 = vweird.f32 %v626
    %vm634 = vmor %vm632, %vm633
    %v635 = vsel %vm634, %v626, %v631
    %v636 = vmul.f32 %v586, %v625
    %v637 = vmul.f32 %v587, %v625
    %v638 = vmul.f32 %v588, %v635
    %v639 = vmul.f32 %v589, %v635
    %v640 = vld [vmem:[%s5] sm:$0x1]
    %v642 = vperm.slane %v640, 0
    %v644 = vmul.f32 %v636, %v642
    %v645 = vmul.f32 %v637, %v642
    %v646 = vmul.f32 %v638, %v642
    %v647 = vmul.f32 %v639, %v642
    %v648 = vld [vmem:[%s6] sm:$0x1]
    %v650 = vperm.slane %v648, 0
    %v652 = vadd.f32 %v644, %v650
    %v653 = vadd.f32 %v645, %v650
    %v654 = vadd.f32 %v646, %v650
    %v655 = vadd.f32 %v647, %v650
    %vm656 = vcmp.gt.f32.partialorder %v652, 0.0
    %vm657 = vcmp.gt.f32.partialorder %v653, 0.0
    %vm658 = vcmp.gt.f32.partialorder %v654, 0.0
    %vm659 = vcmp.gt.f32.partialorder %v655, 0.0
    %v660 = vmul.f32 %v652, 0.2
    %v661 = vmul.f32 %v653, 0.2
    %v662 = vmul.f32 %v654, 0.2
    %v663 = vmul.f32 %v655, 0.2
    %v664 = vsel %vm656, %v652, %v660
    %v665 = vsel %vm657, %v653, %v661
    %v666 = vsel %vm658, %v654, %v662
    %v667 = vsel %vm659, %v655, %v663
    %v668 = vadd.f32 %v664, %v96
    %v669 = vadd.f32 %v665, %v97
    %v670 = vadd.f32 %v666, %v98
    %v671 = vadd.f32 %v667, %v99
    %v672 = vpack.c.bf16 %v668, %v668
    %v673 = vpack.c.bf16 %v669, %v669
    %v674 = vpack.c.bf16 %v670, %v670
    %v675 = vpack.c.bf16 %v671, %v671
    %v680 = vrot.slane %v672, 7
    %v681 = vrot.slane %v680, 4
    %v682 = vrot.slane %v673, 7
    %v683 = vsel %vm116, %v681, %v682
    %v684 = vrot.slane %v682, 4
    %v685 = vrot.slane %v674, 7
    %v686 = vrot.slane %v685, 4
    %v687 = vrot.slane %v675, 7
    %v688 = vsel %vm116, %v686, %v687
    %v689 = vrot.slane %v687, 4
    %696 = vst.msk [vmem:[#allocation2] sm:$0xe] %vm133, %v680
    %697 = vst.msk [vmem:[#allocation2 + $0x4] sm:$0xf] %vm135, %v683
    %698 = vst.msk [vmem:[#allocation2 + $0x8] sm:$0x1] %vm100, %v684
    %699 = vst.msk [vmem:[#allocation2 + $0xc] sm:$0xe] %vm133, %v685
    %700 = vst.msk [vmem:[#allocation2 + $0x10] sm:$0xf] %vm135, %v688
    %701 = vst.msk [vmem:[#allocation2 + $0x14] sm:$0x1] %vm100, %v689
    %v702 = vld [vmem:[#allocation2] sm:$0xf]
    %v703 = vld [vmem:[#allocation2 + $0x4] sm:$0xf]
    %v704 = vld [vmem:[#allocation2 + $0xc] sm:$0xf]
    %v705 = vld [vmem:[#allocation2 + $0x10] sm:$0xf]
    %s706 = scalar_lea.vmem [#allocation3], 80
    %v707 = vld [vmem:[%s706] sm:$0xf]
    %v708 = vld [vmem:[%s706 + $0x4] sm:$0xf]
    %v709 = vld [vmem:[%s706 + $0x8] sm:$0xf]
    %v710 = vld [vmem:[%s706 + $0xc] sm:$0xf]
    %v711 = vld [vmem:[#allocation2 + $0x8] sm:$0x1]
    %v712 = vld [vmem:[#allocation2 + $0x14] sm:$0x1]
    %v714 = vshrl.u32 %v702, 16
    %v716 = vrot.slane %v714, 4
    %v717 = vshll.u32 %v702, 16
    %v719 = vrot.slane %v717, 5
    %v720 = vor.u32 %v716, %v719
    %v721 = vrot.slane %v720, 4
    %v723 = vshll.u32 %v703, 16
    %v725 = vrot.slane %v723, 5
    %v726 = vsel %vm153, %v721, %v725
    %v727 = vshrl.u32 %v703, 16
    %v729 = vrot.slane %v727, 4
    %v730 = vor.u32 %v729, %v725
    %v731 = vrot.slane %v730, 4
    %v733 = vshll.u32 %v711, 16
    %v735 = vrot.slane %v733, 5
    %v736 = vsel %vm153, %v731, %v735
    %v738 = vshrl.u32 %v704, 16
    %v740 = vrot.slane %v738, 4
    %v741 = vshll.u32 %v704, 16
    %v743 = vrot.slane %v741, 5
    %v744 = vor.u32 %v740, %v743
    %v745 = vrot.slane %v744, 4
    %v747 = vshll.u32 %v705, 16
    %v749 = vrot.slane %v747, 5
    %v750 = vsel %vm153, %v745, %v749
    %v751 = vshrl.u32 %v705, 16
    %v753 = vrot.slane %v751, 4
    %v754 = vor.u32 %v753, %v749
    %v755 = vrot.slane %v754, 4
    %v757 = vshll.u32 %v712, 16
    %v759 = vrot.slane %v757, 5
    %v760 = vsel %vm153, %v755, %v759
    %s761 = scalar_lea.vmem [#allocation3], 96
    %v762 = vld [vmem:[%s761] sm:$0xf]
    %v763 = vld [vmem:[%s761 + $0x4] sm:$0xf]
    %v764 = vld [vmem:[%s761 + $0x8] sm:$0xf]
    %v765 = vld [vmem:[%s761 + $0xc] sm:$0xf]
    %v766 = vunpack.c.l.b16 %v726
    %v767 = vunpack.c.l.b16 %v736
    %v768 = vunpack.c.l.b16 %v750
    %v769 = vunpack.c.l.b16 %v760
    %v770 = vpack.c.b16 %v767, %v766
    %v771 = vpack.c.b16 %v769, %v768
    %v776 = vunpack.c.l.b16 %v762
    %v777 = vunpack.c.l.b16 %v763
    %v778 = vunpack.c.l.b16 %v764
    %v779 = vunpack.c.l.b16 %v765
    %v780 = vpack.c.b16 %v777, %v776
    %v781 = vpack.c.b16 %v779, %v778
    %v785 = vsel %vm225, %v770, 0
    %v788 = vsel %vm225, %v771, 0
    %790 = vmatpush.bf16.msra.mxu0 0
    %791 = vmatpush.bf16.msra.mxu0 0
    %792 = vmatpush.bf16.msra.mxu0 0
    %793 = vmatpush.bf16.msra.mxu0 0
    %794 = vmatpush.bf16.msra.mxu0 0
    %795 = vmatpush.bf16.msra.mxu0 0
    %796 = vmatpush.bf16.msra.mxu0 %v781
    %797 = vmatpush.bf16.msra.mxu0 %v780
    %798 = vmatmul.bf16.gmra.mxu0 %v785
    %v799 = vpop.f32.mrf.mxu0
    %v800 = vadd.f32 0.0, %v799
    %v801 = vpop.f32.mrf.mxu0
    %v802 = vadd.f32 0.0, %v801
    %803 = vmatmul.bf16.gmra.mxu0 %v788
    %v804 = vpop.f32.mrf.mxu0
    %v805 = vadd.f32 0.0, %v804
    %v806 = vpop.f32.mrf.mxu0
    %v807 = vadd.f32 0.0, %v806
    %808 = vdwg.mxu0
    %v813 = vunpack.c.l.b16 %v702
    %v814 = vunpack.c.l.b16 %v703
    %v815 = vunpack.c.l.b16 %v704
    %v816 = vunpack.c.l.b16 %v705
    %v817 = vpack.c.b16 %v814, %v813
    %v818 = vpack.c.b16 %v816, %v815
    %v823 = vunpack.c.l.b16 %v707
    %v824 = vunpack.c.l.b16 %v708
    %v825 = vunpack.c.l.b16 %v709
    %v826 = vunpack.c.l.b16 %v710
    %v827 = vpack.c.b16 %v824, %v823
    %v828 = vpack.c.b16 %v826, %v825
    %v832 = vsel %vm225, %v817, 0
    %v835 = vsel %vm225, %v818, 0
    %837 = vmatpush.bf16.msra.mxu0 0
    %838 = vmatpush.bf16.msra.mxu0 0
    %839 = vmatpush.bf16.msra.mxu0 0
    %840 = vmatpush.bf16.msra.mxu0 0
    %841 = vmatpush.bf16.msra.mxu0 0
    %842 = vmatpush.bf16.msra.mxu0 0
    %843 = vmatpush.bf16.msra.mxu0 %v828
    %844 = vmatpush.bf16.msra.mxu0 %v827
    %845 = vmatmul.bf16.gmra.mxu0 %v832
    %v846 = vpop.f32.mrf.mxu0
    %v847 = vadd.f32 %v800, %v846
    %v848 = vpop.f32.mrf.mxu0
    %v849 = vadd.f32 %v802, %v848
    %850 = vmatmul.bf16.gmra.mxu0 %v835
    %v851 = vpop.f32.mrf.mxu0
    %v852 = vadd.f32 %v805, %v851
    %v853 = vpop.f32.mrf.mxu0
    %v854 = vadd.f32 %v807, %v853
    %855 = vdwg.mxu0
    %v856 = vld [vmem:[#allocation2] sm:$0xe]
    %v857 = vld [vmem:[#allocation2 + $0xc] sm:$0xe]
    %v862 = vrot.slane %v856, 5
    %v863 = vrot.slane %v862, 4
    %v864 = vrot.slane %v703, 5
    %v865 = vsel %vm306, %v863, %v864
    %v866 = vrot.slane %v864, 4
    %v867 = vrot.slane %v711, 5
    %v868 = vsel %vm306, %v866, %v867
    %v869 = vrot.slane %v857, 5
    %v870 = vrot.slane %v869, 4
    %v871 = vrot.slane %v705, 5
    %v872 = vsel %vm306, %v870, %v871
    %v873 = vrot.slane %v871, 4
    %v874 = vrot.slane %v712, 5
    %v875 = vsel %vm306, %v873, %v874
    %s876 = scalar_lea.vmem [#allocation3], 112
    %v877 = vld [vmem:[%s876] sm:$0xf]
    %v878 = vld [vmem:[%s876 + $0x4] sm:$0xf]
    %v879 = vld [vmem:[%s876 + $0x8] sm:$0xf]
    %v880 = vld [vmem:[%s876 + $0xc] sm:$0xf]
    %v881 = vunpack.c.l.b16 %v865
    %v882 = vunpack.c.l.b16 %v868
    %v883 = vunpack.c.l.b16 %v872
    %v884 = vunpack.c.l.b16 %v875
    %v885 = vpack.c.b16 %v882, %v881
    %v886 = vpack.c.b16 %v884, %v883
    %v891 = vunpack.c.l.b16 %v877
    %v892 = vunpack.c.l.b16 %v878
    %v893 = vunpack.c.l.b16 %v879
    %v894 = vunpack.c.l.b16 %v880
    %v895 = vpack.c.b16 %v892, %v891
    %v896 = vpack.c.b16 %v894, %v893
    %v900 = vsel %vm225, %v885, 0
    %v903 = vsel %vm225, %v886, 0
    %905 = vmatpush.bf16.msra.mxu0 0
    %906 = vmatpush.bf16.msra.mxu0 0
    %907 = vmatpush.bf16.msra.mxu0 0
    %908 = vmatpush.bf16.msra.mxu0 0
    %909 = vmatpush.bf16.msra.mxu0 0
    %910 = vmatpush.bf16.msra.mxu0 0
    %911 = vmatpush.bf16.msra.mxu0 %v896
    %912 = vmatpush.bf16.msra.mxu0 %v895
    %913 = vmatmul.bf16.gmra.mxu0 %v900
    %v914 = vpop.f32.mrf.mxu0
    %v915 = vadd.f32 0.0, %v914
    %v916 = vpop.f32.mrf.mxu0
    %v917 = vadd.f32 0.0, %v916
    %918 = vmatmul.bf16.gmra.mxu0 %v903
    %v919 = vpop.f32.mrf.mxu0
    %v920 = vadd.f32 0.0, %v919
    %v921 = vpop.f32.mrf.mxu0
    %v922 = vadd.f32 0.0, %v921
    %923 = vdwg.mxu0
    %v924 = vadd.f32 %v847, %v915
    %v925 = vadd.f32 %v849, %v917
    %v926 = vadd.f32 %v852, %v920
    %v927 = vadd.f32 %v854, %v922
    %v928 = vld [vmem:[#allocation2 + $0x8] sm:$0x3]
    %v929 = vld [vmem:[#allocation2 + $0x14] sm:$0x3]
    %v931 = vshrl.u32 %v856, 16
    %v933 = vrot.slane %v931, 5
    %v934 = vshll.u32 %v856, 16
    %v936 = vrot.slane %v934, 6
    %v937 = vor.u32 %v933, %v936
    %v938 = vrot.slane %v937, 4
    %v939 = vrot.slane %v727, 5
    %v940 = vrot.slane %v723, 6
    %v941 = vor.u32 %v939, %v940
    %v942 = vsel %vm377, %v938, %v941
    %v943 = vrot.slane %v941, 4
    %v945 = vshrl.u32 %v928, 16
    %v947 = vrot.slane %v945, 5
    %v948 = vshll.u32 %v928, 16
    %v950 = vrot.slane %v948, 6
    %v951 = vor.u32 %v947, %v950
    %v952 = vsel %vm377, %v943, %v951
    %v954 = vshrl.u32 %v857, 16
    %v956 = vrot.slane %v954, 5
    %v957 = vshll.u32 %v857, 16
    %v959 = vrot.slane %v957, 6
    %v960 = vor.u32 %v956, %v959
    %v961 = vrot.slane %v960, 4
    %v962 = vrot.slane %v751, 5
    %v963 = vrot.slane %v747, 6
    %v964 = vor.u32 %v962, %v963
    %v965 = vsel %vm377, %v961, %v964
    %v966 = vrot.slane %v964, 4
    %v968 = vshrl.u32 %v929, 16
    %v970 = vrot.slane %v968, 5
    %v971 = vshll.u32 %v929, 16
    %v973 = vrot.slane %v971, 6
    %v974 = vor.u32 %v970, %v973
    %v975 = vsel %vm377, %v966, %v974
    %s976 = scalar_lea.vmem [#allocation3], 128
    %v977 = vld [vmem:[%s976] sm:$0xf]
    %v978 = vld [vmem:[%s976 + $0x4] sm:$0xf]
    %v979 = vld [vmem:[%s976 + $0x8] sm:$0xf]
    %v980 = vld [vmem:[%s976 + $0xc] sm:$0xf]
    %v981 = vunpack.c.l.b16 %v942
    %v982 = vunpack.c.l.b16 %v952
    %v983 = vunpack.c.l.b16 %v965
    %v984 = vunpack.c.l.b16 %v975
    %v985 = vpack.c.b16 %v982, %v981
    %v986 = vpack.c.b16 %v984, %v983
    %v991 = vunpack.c.l.b16 %v977
    %v992 = vunpack.c.l.b16 %v978
    %v993 = vunpack.c.l.b16 %v979
    %v994 = vunpack.c.l.b16 %v980
    %v995 = vpack.c.b16 %v992, %v991
    %v996 = vpack.c.b16 %v994, %v993
    %v1000 = vsel %vm225, %v985, 0
    %v1003 = vsel %vm225, %v986, 0
    %1005 = vmatpush.bf16.msra.mxu0 0
    %1006 = vmatpush.bf16.msra.mxu0 0
    %1007 = vmatpush.bf16.msra.mxu0 0
    %1008 = vmatpush.bf16.msra.mxu0 0
    %1009 = vmatpush.bf16.msra.mxu0 0
    %1010 = vmatpush.bf16.msra.mxu0 0
    %1011 = vmatpush.bf16.msra.mxu0 %v996
    %1012 = vmatpush.bf16.msra.mxu0 %v995
    %1013 = vmatmul.bf16.gmra.mxu0 %v1000
    %v1014 = vpop.f32.mrf.mxu0
    %v1015 = vadd.f32 0.0, %v1014
    %v1016 = vpop.f32.mrf.mxu0
    %v1017 = vadd.f32 0.0, %v1016
    %1018 = vmatmul.bf16.gmra.mxu0 %v1003
    %v1019 = vpop.f32.mrf.mxu0
    %v1020 = vadd.f32 0.0, %v1019
    %v1021 = vpop.f32.mrf.mxu0
    %v1022 = vadd.f32 0.0, %v1021
    %1023 = vdwg.mxu0
    %v1024 = vadd.f32 %v924, %v1015
    %v1025 = vadd.f32 %v925, %v1017
    %v1026 = vadd.f32 %v926, %v1020
    %v1027 = vadd.f32 %v927, %v1022
    %v1028 = vld [vmem:[#allocation2] sm:$0xc]
    %v1029 = vld [vmem:[#allocation2 + $0xc] sm:$0xc]
    %v1034 = vrot.slane %v1028, 6
    %v1035 = vrot.slane %v1034, 4
    %v1036 = vrot.slane %v703, 6
    %v1037 = vsel %vm484, %v1035, %v1036
    %v1038 = vrot.slane %v1036, 4
    %v1039 = vrot.slane %v928, 6
    %v1040 = vsel %vm484, %v1038, %v1039
    %v1041 = vrot.slane %v1029, 6
    %v1042 = vrot.slane %v1041, 4
    %v1043 = vrot.slane %v705, 6
    %v1044 = vsel %vm484, %v1042, %v1043
    %v1045 = vrot.slane %v1043, 4
    %v1046 = vrot.slane %v929, 6
    %v1047 = vsel %vm484, %v1045, %v1046
    %s1048 = scalar_lea.vmem [#allocation3], 144
    %v1049 = vld [vmem:[%s1048] sm:$0xf]
    %v1050 = vld [vmem:[%s1048 + $0x4] sm:$0xf]
    %v1051 = vld [vmem:[%s1048 + $0x8] sm:$0xf]
    %v1052 = vld [vmem:[%s1048 + $0xc] sm:$0xf]
    %v1053 = vunpack.c.l.b16 %v1037
    %v1054 = vunpack.c.l.b16 %v1040
    %v1055 = vunpack.c.l.b16 %v1044
    %v1056 = vunpack.c.l.b16 %v1047
    %v1057 = vpack.c.b16 %v1054, %v1053
    %v1058 = vpack.c.b16 %v1056, %v1055
    %v1063 = vunpack.c.l.b16 %v1049
    %v1064 = vunpack.c.l.b16 %v1050
    %v1065 = vunpack.c.l.b16 %v1051
    %v1066 = vunpack.c.l.b16 %v1052
    %v1067 = vpack.c.b16 %v1064, %v1063
    %v1068 = vpack.c.b16 %v1066, %v1065
    %v1072 = vsel %vm225, %v1057, 0
    %v1075 = vsel %vm225, %v1058, 0
    %1077 = vmatpush.bf16.msra.mxu0 0
    %1078 = vmatpush.bf16.msra.mxu0 0
    %1079 = vmatpush.bf16.msra.mxu0 0
    %1080 = vmatpush.bf16.msra.mxu0 0
    %1081 = vmatpush.bf16.msra.mxu0 0
    %1082 = vmatpush.bf16.msra.mxu0 0
    %1083 = vmatpush.bf16.msra.mxu0 %v1068
    %1084 = vmatpush.bf16.msra.mxu0 %v1067
    %1085 = vmatmul.bf16.gmra.mxu0 %v1072
    %v1086 = vpop.f32.mrf.mxu0
    %v1087 = vadd.f32 0.0, %v1086
    %v1088 = vpop.f32.mrf.mxu0
    %v1089 = vadd.f32 0.0, %v1088
    %1090 = vmatmul.bf16.gmra.mxu0 %v1075
    %v1091 = vpop.f32.mrf.mxu0
    %v1092 = vadd.f32 0.0, %v1091
    %v1093 = vpop.f32.mrf.mxu0
    %v1094 = vadd.f32 0.0, %v1093
    %1095 = vdwg.mxu0
    %v1096 = vadd.f32 %v1024, %v1087
    %v1097 = vadd.f32 %v1025, %v1089
    %v1098 = vadd.f32 %v1026, %v1092
    %v1099 = vadd.f32 %v1027, %v1094
    %s1100 = scalar_lea.vmem %s4, 1
    %v1101 = vld [vmem:[%s1100] sm:$0x1]
    %v1103 = vperm.slane %v1101, 0
    %v1105 = vadd.f32 %v1096, %v1103
    %v1106 = vadd.f32 %v1097, %v1103
    %v1107 = vadd.f32 %v1098, %v1103
    %v1108 = vadd.f32 %v1099, %v1103
    %v1109 = vsel %vm225, %v1105, 0.0
    %v1110 = vsel %vm225, %v1106, 0.0
    %v1111 = vadd.f32 %v1109, %v1110
    %v1112 = vrot.slane %v1111, 4
    %v1113 = vadd.f32 %v1111, %v1112
    %v1114 = vrot.slane %v1113, 2
    %v1115 = vadd.f32 %v1113, %v1114
    %v1116 = vrot.slane %v1115, 1
    %v1117 = vadd.f32 %v1115, %v1116
    %v1118 = vsel %vm225, %v1107, 0.0
    %v1119 = vsel %vm225, %v1108, 0.0
    %v1120 = vadd.f32 %v1118, %v1119
    %v1121 = vrot.slane %v1120, 4
    %v1122 = vadd.f32 %v1120, %v1121
    %v1123 = vrot.slane %v1122, 2
    %v1124 = vadd.f32 %v1122, %v1123
    %v1125 = vrot.slane %v1124, 1
    %v1126 = vadd.f32 %v1124, %v1125
    %v1127 = vmul.f32 %v1117, %v583
    %v1128 = vmul.f32 %v1126, %v583
    %v1129 = vsub.f32 %v1105, %v1127
    %v1130 = vsub.f32 %v1106, %v1127
    %v1131 = vsub.f32 %v1107, %v1128
    %v1132 = vsub.f32 %v1108, %v1128
    %v1133 = vmul.f32 %v1129, %v1129
    %v1134 = vmul.f32 %v1130, %v1130
    %v1135 = vmul.f32 %v1131, %v1131
    %v1136 = vmul.f32 %v1132, %v1132
    %v1137 = vsel %vm225, %v1133, 0.0
    %v1138 = vsel %vm225, %v1134, 0.0
    %v1139 = vadd.f32 %v1137, %v1138
    %v1140 = vrot.slane %v1139, 4
    %v1141 = vadd.f32 %v1139, %v1140
    %v1142 = vrot.slane %v1141, 2
    %v1143 = vadd.f32 %v1141, %v1142
    %v1144 = vrot.slane %v1143, 1
    %v1145 = vadd.f32 %v1143, %v1144
    %v1146 = vsel %vm225, %v1135, 0.0
    %v1147 = vsel %vm225, %v1136, 0.0
    %v1148 = vadd.f32 %v1146, %v1147
    %v1149 = vrot.slane %v1148, 4
    %v1150 = vadd.f32 %v1148, %v1149
    %v1151 = vrot.slane %v1150, 2
    %v1152 = vadd.f32 %v1150, %v1151
    %v1153 = vrot.slane %v1152, 1
    %v1154 = vadd.f32 %v1152, %v1153
    %v1155 = vmul.f32 %v1145, %v583
    %v1156 = vmul.f32 %v1154, %v583
    %v1157 = vadd.f32 %v1155, 1e-05
    %v1158 = vadd.f32 %v1156, 1e-05
    %v1159 = vrsqrt.pop %v1157
    %v1160 = vmul.f32 %v1159, %v1157
    %v1161 = vmul.f32 %v1160, %v1159
    %v1162 = vmul.f32 0.5, %v1161
    %v1163 = vsub.f32 1.5, %v1162
    %v1164 = vmul.f32 %v1159, %v1163
    %vm1165 = vweird.f32 %v1157
    %vm1166 = vweird.f32 %v1159
    %vm1167 = vmor %vm1165, %vm1166
    %v1168 = vsel %vm1167, %v1159, %v1164
    %v1169 = vrsqrt.pop %v1158
    %v1170 = vmul.f32 %v1169, %v1158
    %v1171 = vmul.f32 %v1170, %v1169
    %v1172 = vmul.f32 0.5, %v1171
    %v1173 = vsub.f32 1.5, %v1172
    %v1174 = vmul.f32 %v1169, %v1173
    %vm1175 = vweird.f32 %v1158
    %vm1176 = vweird.f32 %v1169
    %vm1177 = vmor %vm1175, %vm1176
    %v1178 = vsel %vm1177, %v1169, %v1174
    %v1179 = vmul.f32 %v1129, %v1168
    %v1180 = vmul.f32 %v1130, %v1168
    %v1181 = vmul.f32 %v1131, %v1178
    %v1182 = vmul.f32 %v1132, %v1178
    %s1183 = scalar_lea.vmem %s5, 1
    %v1184 = vld [vmem:[%s1183] sm:$0x1]
    %v1186 = vperm.slane %v1184, 0
    %v1188 = vmul.f32 %v1179, %v1186
    %v1189 = vmul.f32 %v1180, %v1186
    %v1190 = vmul.f32 %v1181, %v1186
    %v1191 = vmul.f32 %v1182, %v1186
    %s1192 = scalar_lea.vmem %s6, 1
    %v1193 = vld [vmem:[%s1192] sm:$0x1]
    %v1195 = vperm.slane %v1193, 0
    %v1197 = vadd.f32 %v1188, %v1195
    %v1198 = vadd.f32 %v1189, %v1195
    %v1199 = vadd.f32 %v1190, %v1195
    %v1200 = vadd.f32 %v1191, %v1195
    %vm1201 = vcmp.gt.f32.partialorder %v1197, 0.0
    %vm1202 = vcmp.gt.f32.partialorder %v1198, 0.0
    %vm1203 = vcmp.gt.f32.partialorder %v1199, 0.0
    %vm1204 = vcmp.gt.f32.partialorder %v1200, 0.0
    %v1205 = vmul.f32 %v1197, 0.2
    %v1206 = vmul.f32 %v1198, 0.2
    %v1207 = vmul.f32 %v1199, 0.2
    %v1208 = vmul.f32 %v1200, 0.2
    %v1209 = vsel %vm1201, %v1197, %v1205
    %v1210 = vsel %vm1202, %v1198, %v1206
    %v1211 = vsel %vm1203, %v1199, %v1207
    %v1212 = vsel %vm1204, %v1200, %v1208
    %v1213 = vadd.f32 %v1209, %v668
    %v1214 = vadd.f32 %v1210, %v669
    %v1215 = vadd.f32 %v1211, %v670
    %v1216 = vadd.f32 %v1212, %v671
    %v1217 = vpack.c.bf16 %v1213, %v1213
    %v1218 = vpack.c.bf16 %v1214, %v1214
    %v1219 = vpack.c.bf16 %v1215, %v1215
    %v1220 = vpack.c.bf16 %v1216, %v1216
    %v1225 = vrot.slane %v1217, 7
    %v1226 = vrot.slane %v1225, 4
    %v1227 = vrot.slane %v1218, 7
    %v1228 = vsel %vm116, %v1226, %v1227
    %v1229 = vrot.slane %v1227, 4
    %v1230 = vrot.slane %v1219, 7
    %v1231 = vrot.slane %v1230, 4
    %v1232 = vrot.slane %v1220, 7
    %v1233 = vsel %vm116, %v1231, %v1232
    %v1234 = vrot.slane %v1232, 4
    %1241 = vst.msk [vmem:[#allocation2] sm:$0xe] %vm133, %v1225
    %1242 = vst.msk [vmem:[#allocation2 + $0x4] sm:$0xf] %vm135, %v1228
    %1243 = vst.msk [vmem:[#allocation2 + $0x8] sm:$0x1] %vm100, %v1229
    %1244 = vst.msk [vmem:[#allocation2 + $0xc] sm:$0xe] %vm133, %v1230
    %1245 = vst.msk [vmem:[#allocation2 + $0x10] sm:$0xf] %vm135, %v1233
    %1246 = vst.msk [vmem:[#allocation2 + $0x14] sm:$0x1] %vm100, %v1234
    %v1247 = vld [vmem:[#allocation2] sm:$0xf]
    %v1248 = vld [vmem:[#allocation2 + $0x4] sm:$0xf]
    %v1249 = vld [vmem:[#allocation2 + $0xc] sm:$0xf]
    %v1250 = vld [vmem:[#allocation2 + $0x10] sm:$0xf]
    %s1251 = scalar_lea.vmem [#allocation3], 160
    %v1252 = vld [vmem:[%s1251] sm:$0xf]
    %v1253 = vld [vmem:[%s1251 + $0x4] sm:$0xf]
    %v1254 = vld [vmem:[%s1251 + $0x8] sm:$0xf]
    %v1255 = vld [vmem:[%s1251 + $0xc] sm:$0xf]
    %v1256 = vld [vmem:[#allocation2 + $0x8] sm:$0x1]
    %v1257 = vld [vmem:[#allocation2 + $0x14] sm:$0x1]
    %v1259 = vshrl.u32 %v1247, 16
    %v1261 = vrot.slane %v1259, 4
    %v1262 = vshll.u32 %v1247, 16
    %v1264 = vrot.slane %v1262, 5
    %v1265 = vor.u32 %v1261, %v1264
    %v1266 = vrot.slane %v1265, 4
    %v1268 = vshll.u32 %v1248, 16
    %v1270 = vrot.slane %v1268, 5
    %v1271 = vsel %vm153, %v1266, %v1270
    %v1272 = vshrl.u32 %v1248, 16
    %v1274 = vrot.slane %v1272, 4
    %v1275 = vor.u32 %v1274, %v1270
    %v1276 = vrot.slane %v1275, 4
    %v1278 = vshll.u32 %v1256, 16
    %v1280 = vrot.slane %v1278, 5
    %v1281 = vsel %vm153, %v1276, %v1280
    %v1283 = vshrl.u32 %v1249, 16
    %v1285 = vrot.slane %v1283, 4
    %v1286 = vshll.u32 %v1249, 16
    %v1288 = vrot.slane %v1286, 5
    %v1289 = vor.u32 %v1285, %v1288
    %v1290 = vrot.slane %v1289, 4
    %v1292 = vshll.u32 %v1250, 16
    %v1294 = vrot.slane %v1292, 5
    %v1295 = vsel %vm153, %v1290, %v1294
    %v1296 = vshrl.u32 %v1250, 16
    %v1298 = vrot.slane %v1296, 4
    %v1299 = vor.u32 %v1298, %v1294
    %v1300 = vrot.slane %v1299, 4
    %v1302 = vshll.u32 %v1257, 16
    %v1304 = vrot.slane %v1302, 5
    %v1305 = vsel %vm153, %v1300, %v1304
    %s1306 = scalar_lea.vmem [#allocation3], 176
    %v1307 = vld [vmem:[%s1306] sm:$0xf]
    %v1308 = vld [vmem:[%s1306 + $0x4] sm:$0xf]
    %v1309 = vld [vmem:[%s1306 + $0x8] sm:$0xf]
    %v1310 = vld [vmem:[%s1306 + $0xc] sm:$0xf]
    %v1311 = vunpack.c.l.b16 %v1271
    %v1312 = vunpack.c.l.b16 %v1281
    %v1313 = vunpack.c.l.b16 %v1295
    %v1314 = vunpack.c.l.b16 %v1305
    %v1315 = vpack.c.b16 %v1312, %v1311
    %v1316 = vpack.c.b16 %v1314, %v1313
    %v1321 = vunpack.c.l.b16 %v1307
    %v1322 = vunpack.c.l.b16 %v1308
    %v1323 = vunpack.c.l.b16 %v1309
    %v1324 = vunpack.c.l.b16 %v1310
    %v1325 = vpack.c.b16 %v1322, %v1321
    %v1326 = vpack.c.b16 %v1324, %v1323
    %v1330 = vsel %vm225, %v1315, 0
    %v1333 = vsel %vm225, %v1316, 0
    %1335 = vmatpush.bf16.msra.mxu0 0
    %1336 = vmatpush.bf16.msra.mxu0 0
    %1337 = vmatpush.bf16.msra.mxu0 0
    %1338 = vmatpush.bf16.msra.mxu0 0
    %1339 = vmatpush.bf16.msra.mxu0 0
    %1340 = vmatpush.bf16.msra.mxu0 0
    %1341 = vmatpush.bf16.msra.mxu0 %v1326
    %1342 = vmatpush.bf16.msra.mxu0 %v1325
    %1343 = vmatmul.bf16.gmra.mxu0 %v1330
    %v1344 = vpop.f32.mrf.mxu0
    %v1345 = vadd.f32 0.0, %v1344
    %v1346 = vpop.f32.mrf.mxu0
    %v1347 = vadd.f32 0.0, %v1346
    %1348 = vmatmul.bf16.gmra.mxu0 %v1333
    %v1349 = vpop.f32.mrf.mxu0
    %v1350 = vadd.f32 0.0, %v1349
    %v1351 = vpop.f32.mrf.mxu0
    %v1352 = vadd.f32 0.0, %v1351
    %1353 = vdwg.mxu0
    %v1358 = vunpack.c.l.b16 %v1247
    %v1359 = vunpack.c.l.b16 %v1248
    %v1360 = vunpack.c.l.b16 %v1249
    %v1361 = vunpack.c.l.b16 %v1250
    %v1362 = vpack.c.b16 %v1359, %v1358
    %v1363 = vpack.c.b16 %v1361, %v1360
    %v1368 = vunpack.c.l.b16 %v1252
    %v1369 = vunpack.c.l.b16 %v1253
    %v1370 = vunpack.c.l.b16 %v1254
    %v1371 = vunpack.c.l.b16 %v1255
    %v1372 = vpack.c.b16 %v1369, %v1368
    %v1373 = vpack.c.b16 %v1371, %v1370
    %v1377 = vsel %vm225, %v1362, 0
    %v1380 = vsel %vm225, %v1363, 0
    %1382 = vmatpush.bf16.msra.mxu0 0
    %1383 = vmatpush.bf16.msra.mxu0 0
    %1384 = vmatpush.bf16.msra.mxu0 0
    %1385 = vmatpush.bf16.msra.mxu0 0
    %1386 = vmatpush.bf16.msra.mxu0 0
    %1387 = vmatpush.bf16.msra.mxu0 0
    %1388 = vmatpush.bf16.msra.mxu0 %v1373
    %1389 = vmatpush.bf16.msra.mxu0 %v1372
    %1390 = vmatmul.bf16.gmra.mxu0 %v1377
    %v1391 = vpop.f32.mrf.mxu0
    %v1392 = vadd.f32 %v1345, %v1391
    %v1393 = vpop.f32.mrf.mxu0
    %v1394 = vadd.f32 %v1347, %v1393
    %1395 = vmatmul.bf16.gmra.mxu0 %v1380
    %v1396 = vpop.f32.mrf.mxu0
    %v1397 = vadd.f32 %v1350, %v1396
    %v1398 = vpop.f32.mrf.mxu0
    %v1399 = vadd.f32 %v1352, %v1398
    %1400 = vdwg.mxu0
    %v1401 = vld [vmem:[#allocation2] sm:$0xe]
    %v1402 = vld [vmem:[#allocation2 + $0xc] sm:$0xe]
    %v1407 = vrot.slane %v1401, 5
    %v1408 = vrot.slane %v1407, 4
    %v1409 = vrot.slane %v1248, 5
    %v1410 = vsel %vm306, %v1408, %v1409
    %v1411 = vrot.slane %v1409, 4
    %v1412 = vrot.slane %v1256, 5
    %v1413 = vsel %vm306, %v1411, %v1412
    %v1414 = vrot.slane %v1402, 5
    %v1415 = vrot.slane %v1414, 4
    %v1416 = vrot.slane %v1250, 5
    %v1417 = vsel %vm306, %v1415, %v1416
    %v1418 = vrot.slane %v1416, 4
    %v1419 = vrot.slane %v1257, 5
    %v1420 = vsel %vm306, %v1418, %v1419
    %s1421 = scalar_lea.vmem [#allocation3], 192
    %v1422 = vld [vmem:[%s1421] sm:$0xf]
    %v1423 = vld [vmem:[%s1421 + $0x4] sm:$0xf]
    %v1424 = vld [vmem:[%s1421 + $0x8] sm:$0xf]
    %v1425 = vld [vmem:[%s1421 + $0xc] sm:$0xf]
    %v1426 = vunpack.c.l.b16 %v1410
    %v1427 = vunpack.c.l.b16 %v1413
    %v1428 = vunpack.c.l.b16 %v1417
    %v1429 = vunpack.c.l.b16 %v1420
    %v1430 = vpack.c.b16 %v1427, %v1426
    %v1431 = vpack.c.b16 %v1429, %v1428
    %v1436 = vunpack.c.l.b16 %v1422
    %v1437 = vunpack.c.l.b16 %v1423
    %v1438 = vunpack.c.l.b16 %v1424
    %v1439 = vunpack.c.l.b16 %v1425
    %v1440 = vpack.c.b16 %v1437, %v1436
    %v1441 = vpack.c.b16 %v1439, %v1438
    %v1445 = vsel %vm225, %v1430, 0
    %v1448 = vsel %vm225, %v1431, 0
    %1450 = vmatpush.bf16.msra.mxu0 0
    %1451 = vmatpush.bf16.msra.mxu0 0
    %1452 = vmatpush.bf16.msra.mxu0 0
    %1453 = vmatpush.bf16.msra.mxu0 0
    %1454 = vmatpush.bf16.msra.mxu0 0
    %1455 = vmatpush.bf16.msra.mxu0 0
    %1456 = vmatpush.bf16.msra.mxu0 %v1441
    %1457 = vmatpush.bf16.msra.mxu0 %v1440
    %1458 = vmatmul.bf16.gmra.mxu0 %v1445
    %v1459 = vpop.f32.mrf.mxu0
    %v1460 = vadd.f32 0.0, %v1459
    %v1461 = vpop.f32.mrf.mxu0
    %v1462 = vadd.f32 0.0, %v1461
    %1463 = vmatmul.bf16.gmra.mxu0 %v1448
    %v1464 = vpop.f32.mrf.mxu0
    %v1465 = vadd.f32 0.0, %v1464
    %v1466 = vpop.f32.mrf.mxu0
    %v1467 = vadd.f32 0.0, %v1466
    %1468 = vdwg.mxu0
    %v1469 = vadd.f32 %v1392, %v1460
    %v1470 = vadd.f32 %v1394, %v1462
    %v1471 = vadd.f32 %v1397, %v1465
    %v1472 = vadd.f32 %v1399, %v1467
    %v1473 = vld [vmem:[#allocation2 + $0x8] sm:$0x3]
    %v1474 = vld [vmem:[#allocation2 + $0x14] sm:$0x3]
    %v1476 = vshrl.u32 %v1401, 16
    %v1478 = vrot.slane %v1476, 5
    %v1479 = vshll.u32 %v1401, 16
    %v1481 = vrot.slane %v1479, 6
    %v1482 = vor.u32 %v1478, %v1481
    %v1483 = vrot.slane %v1482, 4
    %v1484 = vrot.slane %v1272, 5
    %v1485 = vrot.slane %v1268, 6
    %v1486 = vor.u32 %v1484, %v1485
    %v1487 = vsel %vm377, %v1483, %v1486
    %v1488 = vrot.slane %v1486, 4
    %v1490 = vshrl.u32 %v1473, 16
    %v1492 = vrot.slane %v1490, 5
    %v1493 = vshll.u32 %v1473, 16
    %v1495 = vrot.slane %v1493, 6
    %v1496 = vor.u32 %v1492, %v1495
    %v1497 = vsel %vm377, %v1488, %v1496
    %v1499 = vshrl.u32 %v1402, 16
    %v1501 = vrot.slane %v1499, 5
    %v1502 = vshll.u32 %v1402, 16
    %v1504 = vrot.slane %v1502, 6
    %v1505 = vor.u32 %v1501, %v1504
    %v1506 = vrot.slane %v1505, 4
    %v1507 = vrot.slane %v1296, 5
    %v1508 = vrot.slane %v1292, 6
    %v1509 = vor.u32 %v1507, %v1508
    %v1510 = vsel %vm377, %v1506, %v1509
    %v1511 = vrot.slane %v1509, 4
    %v1513 = vshrl.u32 %v1474, 16
    %v1515 = vrot.slane %v1513, 5
    %v1516 = vshll.u32 %v1474, 16
    %v1518 = vrot.slane %v1516, 6
    %v1519 = vor.u32 %v1515, %v1518
    %v1520 = vsel %vm377, %v1511, %v1519
    %s1521 = scalar_lea.vmem [#allocation3], 208
    %v1522 = vld [vmem:[%s1521] sm:$0xf]
    %v1523 = vld [vmem:[%s1521 + $0x4] sm:$0xf]
    %v1524 = vld [vmem:[%s1521 + $0x8] sm:$0xf]
    %v1525 = vld [vmem:[%s1521 + $0xc] sm:$0xf]
    %v1526 = vunpack.c.l.b16 %v1487
    %v1527 = vunpack.c.l.b16 %v1497
    %v1528 = vunpack.c.l.b16 %v1510
    %v1529 = vunpack.c.l.b16 %v1520
    %v1530 = vpack.c.b16 %v1527, %v1526
    %v1531 = vpack.c.b16 %v1529, %v1528
    %v1536 = vunpack.c.l.b16 %v1522
    %v1537 = vunpack.c.l.b16 %v1523
    %v1538 = vunpack.c.l.b16 %v1524
    %v1539 = vunpack.c.l.b16 %v1525
    %v1540 = vpack.c.b16 %v1537, %v1536
    %v1541 = vpack.c.b16 %v1539, %v1538
    %v1545 = vsel %vm225, %v1530, 0
    %v1548 = vsel %vm225, %v1531, 0
    %1550 = vmatpush.bf16.msra.mxu0 0
    %1551 = vmatpush.bf16.msra.mxu0 0
    %1552 = vmatpush.bf16.msra.mxu0 0
    %1553 = vmatpush.bf16.msra.mxu0 0
    %1554 = vmatpush.bf16.msra.mxu0 0
    %1555 = vmatpush.bf16.msra.mxu0 0
    %1556 = vmatpush.bf16.msra.mxu0 %v1541
    %1557 = vmatpush.bf16.msra.mxu0 %v1540
    %1558 = vmatmul.bf16.gmra.mxu0 %v1545
    %v1559 = vpop.f32.mrf.mxu0
    %v1560 = vadd.f32 0.0, %v1559
    %v1561 = vpop.f32.mrf.mxu0
    %v1562 = vadd.f32 0.0, %v1561
    %1563 = vmatmul.bf16.gmra.mxu0 %v1548
    %v1564 = vpop.f32.mrf.mxu0
    %v1565 = vadd.f32 0.0, %v1564
    %v1566 = vpop.f32.mrf.mxu0
    %v1567 = vadd.f32 0.0, %v1566
    %1568 = vdwg.mxu0
    %v1569 = vadd.f32 %v1469, %v1560
    %v1570 = vadd.f32 %v1470, %v1562
    %v1571 = vadd.f32 %v1471, %v1565
    %v1572 = vadd.f32 %v1472, %v1567
    %v1573 = vld [vmem:[#allocation2] sm:$0xc]
    %v1574 = vld [vmem:[#allocation2 + $0xc] sm:$0xc]
    %v1579 = vrot.slane %v1573, 6
    %v1580 = vrot.slane %v1579, 4
    %v1581 = vrot.slane %v1248, 6
    %v1582 = vsel %vm484, %v1580, %v1581
    %v1583 = vrot.slane %v1581, 4
    %v1584 = vrot.slane %v1473, 6
    %v1585 = vsel %vm484, %v1583, %v1584
    %v1586 = vrot.slane %v1574, 6
    %v1587 = vrot.slane %v1586, 4
    %v1588 = vrot.slane %v1250, 6
    %v1589 = vsel %vm484, %v1587, %v1588
    %v1590 = vrot.slane %v1588, 4
    %v1591 = vrot.slane %v1474, 6
    %v1592 = vsel %vm484, %v1590, %v1591
    %s1593 = scalar_lea.vmem [#allocation3], 224
    %v1594 = vld [vmem:[%s1593] sm:$0xf]
    %v1595 = vld [vmem:[%s1593 + $0x4] sm:$0xf]
    %v1596 = vld [vmem:[%s1593 + $0x8] sm:$0xf]
    %v1597 = vld [vmem:[%s1593 + $0xc] sm:$0xf]
    %v1598 = vunpack.c.l.b16 %v1582
    %v1599 = vunpack.c.l.b16 %v1585
    %v1600 = vunpack.c.l.b16 %v1589
    %v1601 = vunpack.c.l.b16 %v1592
    %v1602 = vpack.c.b16 %v1599, %v1598
    %v1603 = vpack.c.b16 %v1601, %v1600
    %v1608 = vunpack.c.l.b16 %v1594
    %v1609 = vunpack.c.l.b16 %v1595
    %v1610 = vunpack.c.l.b16 %v1596
    %v1611 = vunpack.c.l.b16 %v1597
    %v1612 = vpack.c.b16 %v1609, %v1608
    %v1613 = vpack.c.b16 %v1611, %v1610
    %v1617 = vsel %vm225, %v1602, 0
    %v1620 = vsel %vm225, %v1603, 0
    %1622 = vmatpush.bf16.msra.mxu0 0
    %1623 = vmatpush.bf16.msra.mxu0 0
    %1624 = vmatpush.bf16.msra.mxu0 0
    %1625 = vmatpush.bf16.msra.mxu0 0
    %1626 = vmatpush.bf16.msra.mxu0 0
    %1627 = vmatpush.bf16.msra.mxu0 0
    %1628 = vmatpush.bf16.msra.mxu0 %v1613
    %1629 = vmatpush.bf16.msra.mxu0 %v1612
    %1630 = vmatmul.bf16.gmra.mxu0 %v1617
    %v1631 = vpop.f32.mrf.mxu0
    %v1632 = vadd.f32 0.0, %v1631
    %v1633 = vpop.f32.mrf.mxu0
    %v1634 = vadd.f32 0.0, %v1633
    %1635 = vmatmul.bf16.gmra.mxu0 %v1620
    %v1636 = vpop.f32.mrf.mxu0
    %v1637 = vadd.f32 0.0, %v1636
    %v1638 = vpop.f32.mrf.mxu0
    %v1639 = vadd.f32 0.0, %v1638
    %1640 = vdwg.mxu0
    %v1641 = vadd.f32 %v1569, %v1632
    %v1642 = vadd.f32 %v1570, %v1634
    %v1643 = vadd.f32 %v1571, %v1637
    %v1644 = vadd.f32 %v1572, %v1639
    %s1645 = scalar_lea.vmem %s4, 2
    %v1646 = vld [vmem:[%s1645] sm:$0x1]
    %v1648 = vperm.slane %v1646, 0
    %v1650 = vadd.f32 %v1641, %v1648
    %v1651 = vadd.f32 %v1642, %v1648
    %v1652 = vadd.f32 %v1643, %v1648
    %v1653 = vadd.f32 %v1644, %v1648
    %v1654 = vsel %vm225, %v1650, 0.0
    %v1655 = vsel %vm225, %v1651, 0.0
    %v1656 = vadd.f32 %v1654, %v1655
    %v1657 = vrot.slane %v1656, 4
    %v1658 = vadd.f32 %v1656, %v1657
    %v1659 = vrot.slane %v1658, 2
    %v1660 = vadd.f32 %v1658, %v1659
    %v1661 = vrot.slane %v1660, 1
    %v1662 = vadd.f32 %v1660, %v1661
    %v1663 = vsel %vm225, %v1652, 0.0
    %v1664 = vsel %vm225, %v1653, 0.0
    %v1665 = vadd.f32 %v1663, %v1664
    %v1666 = vrot.slane %v1665, 4
    %v1667 = vadd.f32 %v1665, %v1666
    %v1668 = vrot.slane %v1667, 2
    %v1669 = vadd.f32 %v1667, %v1668
    %v1670 = vrot.slane %v1669, 1
    %v1671 = vadd.f32 %v1669, %v1670
    %v1672 = vmul.f32 %v1662, %v583
    %v1673 = vmul.f32 %v1671, %v583
    %v1674 = vsub.f32 %v1650, %v1672
    %v1675 = vsub.f32 %v1651, %v1672
    %v1676 = vsub.f32 %v1652, %v1673
    %v1677 = vsub.f32 %v1653, %v1673
    %v1678 = vmul.f32 %v1674, %v1674
    %v1679 = vmul.f32 %v1675, %v1675
    %v1680 = vmul.f32 %v1676, %v1676
    %v1681 = vmul.f32 %v1677, %v1677
    %v1682 = vsel %vm225, %v1678, 0.0
    %v1683 = vsel %vm225, %v1679, 0.0
    %v1684 = vadd.f32 %v1682, %v1683
    %v1685 = vrot.slane %v1684, 4
    %v1686 = vadd.f32 %v1684, %v1685
    %v1687 = vrot.slane %v1686, 2
    %v1688 = vadd.f32 %v1686, %v1687
    %v1689 = vrot.slane %v1688, 1
    %v1690 = vadd.f32 %v1688, %v1689
    %v1691 = vsel %vm225, %v1680, 0.0
    %v1692 = vsel %vm225, %v1681, 0.0
    %v1693 = vadd.f32 %v1691, %v1692
    %v1694 = vrot.slane %v1693, 4
    %v1695 = vadd.f32 %v1693, %v1694
    %v1696 = vrot.slane %v1695, 2
    %v1697 = vadd.f32 %v1695, %v1696
    %v1698 = vrot.slane %v1697, 1
    %v1699 = vadd.f32 %v1697, %v1698
    %v1700 = vmul.f32 %v1690, %v583
    %v1701 = vmul.f32 %v1699, %v583
    %v1702 = vadd.f32 %v1700, 1e-05
    %v1703 = vadd.f32 %v1701, 1e-05
    %v1704 = vrsqrt.pop %v1702
    %v1705 = vmul.f32 %v1704, %v1702
    %v1706 = vmul.f32 %v1705, %v1704
    %v1707 = vmul.f32 0.5, %v1706
    %v1708 = vsub.f32 1.5, %v1707
    %v1709 = vmul.f32 %v1704, %v1708
    %vm1710 = vweird.f32 %v1702
    %vm1711 = vweird.f32 %v1704
    %vm1712 = vmor %vm1710, %vm1711
    %v1713 = vsel %vm1712, %v1704, %v1709
    %v1714 = vrsqrt.pop %v1703
    %v1715 = vmul.f32 %v1714, %v1703
    %v1716 = vmul.f32 %v1715, %v1714
    %v1717 = vmul.f32 0.5, %v1716
    %v1718 = vsub.f32 1.5, %v1717
    %v1719 = vmul.f32 %v1714, %v1718
    %vm1720 = vweird.f32 %v1703
    %vm1721 = vweird.f32 %v1714
    %vm1722 = vmor %vm1720, %vm1721
    %v1723 = vsel %vm1722, %v1714, %v1719
    %v1724 = vmul.f32 %v1674, %v1713
    %v1725 = vmul.f32 %v1675, %v1713
    %v1726 = vmul.f32 %v1676, %v1723
    %v1727 = vmul.f32 %v1677, %v1723
    %s1728 = scalar_lea.vmem %s5, 2
    %v1729 = vld [vmem:[%s1728] sm:$0x1]
    %v1731 = vperm.slane %v1729, 0
    %v1733 = vmul.f32 %v1724, %v1731
    %v1734 = vmul.f32 %v1725, %v1731
    %v1735 = vmul.f32 %v1726, %v1731
    %v1736 = vmul.f32 %v1727, %v1731
    %s1737 = scalar_lea.vmem %s6, 2
    %v1738 = vld [vmem:[%s1737] sm:$0x1]
    %v1740 = vperm.slane %v1738, 0
    %v1742 = vadd.f32 %v1733, %v1740
    %v1743 = vadd.f32 %v1734, %v1740
    %v1744 = vadd.f32 %v1735, %v1740
    %v1745 = vadd.f32 %v1736, %v1740
    %vm1746 = vcmp.gt.f32.partialorder %v1742, 0.0
    %vm1747 = vcmp.gt.f32.partialorder %v1743, 0.0
    %vm1748 = vcmp.gt.f32.partialorder %v1744, 0.0
    %vm1749 = vcmp.gt.f32.partialorder %v1745, 0.0
    %v1750 = vmul.f32 %v1742, 0.2
    %v1751 = vmul.f32 %v1743, 0.2
    %v1752 = vmul.f32 %v1744, 0.2
    %v1753 = vmul.f32 %v1745, 0.2
    %v1754 = vsel %vm1746, %v1742, %v1750
    %v1755 = vsel %vm1747, %v1743, %v1751
    %v1756 = vsel %vm1748, %v1744, %v1752
    %v1757 = vsel %vm1749, %v1745, %v1753
    %v1758 = vadd.f32 %v1754, %v1213
    %v1759 = vadd.f32 %v1755, %v1214
    %v1760 = vadd.f32 %v1756, %v1215
    %v1761 = vadd.f32 %v1757, %v1216
    %v1762 = vsel %vm225, %v1758, 0.0
    %1763 = vadd.xlane.f32.xlu0 %v1762
    %v1764 = vpop.xlane.xlu0 %1763
    %v1765 = vsel %vm225, %v1759, 0.0
    %1766 = vadd.xlane.f32.xlu0 %v1765
    %v1767 = vpop.xlane.xlu0 %1766
    %v1768 = vsel %vm225, %v1760, 0.0
    %1769 = vadd.xlane.f32.xlu0 %v1768
    %v1770 = vpop.xlane.xlu0 %1769
    %v1771 = vsel %vm225, %v1761, 0.0
    %1772 = vadd.xlane.f32.xlu0 %v1771
    %v1773 = vpop.xlane.xlu0 %1772
    %v1778 = vlaneseq
    %v1779 = vand.u32 %v1778, 127
    %v1780 = vperm.slane %v1764, %v1779
    %v1781 = vadd.s32 %v1779, 4294967288
    %v1782 = vperm.slane %v1767, %v1781
    %vm1783 = vcmask 130112
    %v1784 = vsel %vm1783, %v1782, %v1780
    %v1785 = vperm.slane %v1770, %v1779
    %v1786 = vperm.slane %v1773, %v1781
    %v1787 = vsel %vm1783, %v1786, %v1785
    %vm1788 = vcmask 1041409
    %v1789 = vsel %vm1788, %v1787, %v1784
    %vm1791 = vcmask 123904
    %v1792 = vsel %vm1791, %v1789, 0.0
    %1793 = vadd.xlane.f32.xlu0 %v1792
    %v1794 = vpop.xlane.xlu0 %1793
    %v1795 = vmul.f32 %v1794, 0.001953125
    %vm1796 = vcmask 1024
    %1797 = vst.msk [vmem:[%s7] sm:$0x3] %vm1796, %v1795
    // Predicated region
    $region34: #{tpu_custom_call.1} parent=1 // pred_check
      _
    $region35: #{tpu_custom_call.1} parent=1 // pred_check_branch
      %1799 = sbr.rel (0) target = $region37
    $region36: #{tpu_custom_call.1} parent=1 // pred_region
      _
    $region37: #{tpu_custom_call.1} parent=1 // pred_fallthru
      _
    // Predicated region
    $region38: #{tpu_custom_call.1} parent=1 // pred_check
      _
    $region39: #{tpu_custom_call.1} parent=1 // pred_check_branch
      %1801 = sbr.rel (0) target = $region41
    $region40: #{tpu_custom_call.1} parent=1 // pred_region
      _
    $region41: #{tpu_custom_call.1} parent=1 // pred_fallthru
      _
    %1802 = vsyncpa [#allocation4], 1

</llo_original>
